<compile_context>
chip_gen: v6e
topology: v6e:2x2x1
jax: 0.10.0
libtpu: 0.0.40
codegen_flags: <defaults>
</compile_context>

<pallas_src>
import jax
import jax.numpy as jnp
from jax.experimental import pallas as pl
from jax.experimental.pallas import tpu as pltpu

# ---- synthetic tiny config (shapes implied by the module's forward) ----------
VOCAB      = 100
HIDDEN     = 32
NUM_HEADS  = 2
HEAD_DIM   = HIDDEN // NUM_HEADS
INTER      = 64
NUM_LAYERS = 2
MAX_POS    = 16
PAD_ID     = 0          # tokenizer.pad_token_id
LN_EPS     = 1e-12      # BERT default layer-norm eps


# ----------------------------- in-kernel helpers ------------------------------
def _layernorm(y, g, b):
    mean = jnp.mean(y, axis=-1, keepdims=True)
    var = jnp.mean(jnp.square(y - mean), axis=-1, keepdims=True)
    return (y - mean) * jax.lax.rsqrt(var + LN_EPS) * g + b


def _gelu(x):
    # TODO(synk): HF BERT uses exact erf-GELU; tanh approximation used here
    # (difference ~1e-3 relative) to keep the op on VPU/EUP-friendly primitives.
    c = 0.7978845608028654  # sqrt(2/pi)
    return 0.5 * x * (1.0 + jnp.tanh(c * (x + 0.044715 * x * x * x)))


# ------------------------------ fused Pallas kernel ---------------------------
def _make_encoder_kernel(*, seq_len, num_layers):
    S = seq_len
    L = num_layers
    H = HIDDEN
    D = HEAD_DIM

    def kernel(emb_ref, aux_ref, vecs_ref, wqkv_ref, wo_ref, w1_ref, w2_ref, o_ref):
        R = o_ref.shape[0]                       # packed rows of this batch tile

        def vec(row, width):                     # static slice of the packed-vector slab
            return vecs_ref[row:row + 1, :width]     # (1, width)

        # --- packed-rows additive attention bias, built in-kernel (O(R) HBM input) ---
        aux = aux_ref[0]                         # (2, R): row0 = pad bias, row1 = seq start
        key_bias = aux[0:1, :]                   # (1, R)  0.0 / -10000.0 per key
        k_start = aux[1:2, :]                    # (1, R)  row index where the key's sequence starts
        qi = jax.lax.broadcasted_iota(jnp.int32, (R, R), 0).astype(jnp.float32)
        same_seq = (qi >= k_start) & (qi < k_start + jnp.float32(S))
        # cross-sequence keys masked harder than pad keys so a fully-padded
        # sequence never leaks attention across sequences (matches reference).
        attn_bias = jnp.where(same_seq, key_bias, jnp.float32(-1e30))   # (R, R)

        # --- embedding LayerNorm folded into the kernel ---
        x = _layernorm(emb_ref[...], vec(0, H), vec(1, H))              # (R, H) f32

        for l in range(L):                       # static unroll of the tiny layer stack
            base = 2 + 8 * l
            bqkv = vec(base + 0, 3 * H)
            bo   = vec(base + 1, H)
            ln1g = vec(base + 2, H)
            ln1b = vec(base + 3, H)
            b1   = vec(base + 4, INTER)
            b2   = vec(base + 5, H)
            ln2g = vec(base + 6, H)
            ln2b = vec(base + 7, H)

            xb = x.astype(jnp.bfloat16)
            # Fused QKV: one MXU push, one bias add.  1/sqrt(D) already folded
            # into the Q columns of wqkv at init.
            qkv = jnp.dot(xb, wqkv_ref[l],
                          preferred_element_type=jnp.float32) + bqkv    # (R, 3H) f32
            qkvb = qkv.astype(jnp.bfloat16)      # single bf16 cast of the whole tile

            ctx_heads = []
            for h in range(NUM_HEADS):           # static unroll (NUM_HEADS == 2)
                qh = qkvb[:, h * D:(h + 1) * D]
                kh = qkvb[:, H + h * D:H + (h + 1) * D]
                vh = qkvb[:, 2 * H + h * D:2 * H + (h + 1) * D]

                # contract dim 1 of both operands -> no explicit kh.T / XLU transpose
                s = jax.lax.dot_general(qh, kh, (((1,), (1,)), ((), ())),
                                        preferred_element_type=jnp.float32) + attn_bias
                m = jnp.max(s, axis=-1, keepdims=True)
                p = jnp.exp(s - m)
                denom = jnp.sum(p, axis=-1, keepdims=True)
                ctx_h = jnp.dot(p.astype(jnp.bfloat16), vh,
                                preferred_element_type=jnp.float32)     # (R, D)
                # normalize the small (R, D) context (exact divide for parity)
                ctx_heads.append(ctx_h / denom)
            ctx = jnp.concatenate(ctx_heads, axis=-1)                   # (R, H)

            attn_out = jnp.dot(ctx.astype(jnp.bfloat16), wo_ref[l],
                               preferred_element_type=jnp.float32) + bo
            h1 = _layernorm(x + attn_out, ln1g, ln1b)

            ff = _gelu(jnp.dot(h1.astype(jnp.bfloat16), w1_ref[l],
                               preferred_element_type=jnp.float32) + b1)
            ff = jnp.dot(ff.astype(jnp.bfloat16), w2_ref[l],
                         preferred_element_type=jnp.float32) + b2
            x = _layernorm(h1 + ff, ln2g, ln2b)

        # With HIDDEN=32 this store uses 32/128 lanes (masked vst); at real H
        # (multiple of 128) it becomes lane-dense automatically.
        o_ref[...] = x

    return kernel


# ------------------------------ pallas_call wrapper ---------------------------
def _fused_encoder(emb2d, key_aux, params, *, seq_len):
    """emb2d: (B*S, H) f32; key_aux: (n_bt, 2, R) f32 (pad bias + seq starts)."""
    BS, H = emb2d.shape
    n_bt = key_aux.shape[0]
    R = key_aux.shape[2]
    L = params['wqkv'].shape[0]

    kernel = _make_encoder_kernel(seq_len=seq_len, num_layers=L)

    act_spec = pl.BlockSpec((R, H), lambda bt: (bt, 0))
    aux_spec = pl.BlockSpec((1, 2, R), lambda bt: (bt, 0, 0))

    def full_spec(arr):
        nd = arr.ndim
        # full-size block, constant index -> DMA'd once, resident across grid steps
        return pl.BlockSpec(arr.shape, lambda bt: (0,) * nd)

    return pl.pallas_call(
        kernel,
        out_shape=jax.ShapeDtypeStruct((BS, H), jnp.float32),
        grid=(n_bt,),
        in_specs=[act_spec, aux_spec, full_spec(params['vecs']),
                  full_spec(params['wqkv']), full_spec(params['wo']),
                  full_spec(params['w1']), full_spec(params['w2'])],
        out_specs=act_spec,
        compiler_params=pltpu.CompilerParams(
            dimension_semantics=("parallel",)),
    )(emb2d, key_aux, params['vecs'], params['wqkv'], params['wo'],
      params['w1'], params['w2'])


# ------------------------------- model forward --------------------------------
def wordpiece_transformers_forward(word_pieces, params, *, b_tile=None):
    """Reproduces _WordPieceTransformersModel.forward with layers='-1'."""
    B, S = word_pieces.shape
    if b_tile is None:
        # >=2 batch tiles when possible so both v7x TensorCores get work; keep
        # R = b_tile*S a multiple of 8 (sublane tiling).
        half = B // 2
        if B >= 2 and B % 2 == 0 and (half * S) % 8 == 0:
            b_tile = half
        else:
            b_tile = B
    assert B % b_tile == 0
    n_bt = B // b_tile
    R = b_tile * S
    assert (R % 8 == 0) or (n_bt == 1)

    # O(R) per-key info; the O(R^2) block-diagonal mask is built inside the kernel.
    mask = (word_pieces != PAD_ID).reshape(n_bt, R)               # (n_bt, R)
    key_bias = jnp.where(mask, 0.0, -10000.0)                     # pad keys: -1e4 (as HF BERT)
    k_start = ((jnp.arange(R, dtype=jnp.int32) // S) * S).astype(jnp.float32)
    k_start = jnp.broadcast_to(k_start, (n_bt, R))
    key_aux = jnp.stack([key_bias, k_start], axis=1).astype(jnp.float32)  # (n_bt, 2, R)

    # Embedding gather + position + token_type(=0) stays in plain JAX (glue);
    # the embedding LayerNorm is fused into the kernel.
    emb = (params['word_emb'][word_pieces]
           + params['pos_emb'][:S][None, :, :]
           + params['type_emb'][0][None, None, :])
    emb2d = emb.reshape(B * S, HIDDEN).astype(jnp.float32)

    h2d = _fused_encoder(emb2d, key_aux, params, seq_len=S)
    h = h2d.reshape(B, S, HIDDEN)

    # only_last_layer=True, layers=['-1'] -> stack just the final hidden states.
    return h[None]                                                # (1, B, S, H)


# ------------------------------ deterministic init ----------------------------
def init_params(key):
    keys = iter(jax.random.split(key, 64))

    def dense(shape):
        return jax.random.normal(next(keys), shape, jnp.float32) * 0.02

    L = NUM_LAYERS
    word_emb = dense((VOCAB, HIDDEN))
    pos_emb = dense((MAX_POS, HIDDEN))
    type_emb = dense((2, HIDDEN))
    emb_ln_g = jnp.ones((HIDDEN,), jnp.float32)
    emb_ln_b = jnp.zeros((HIDDEN,), jnp.float32)

    wqkv = dense((L, HIDDEN, 3 * HIDDEN))
    bqkv = jnp.zeros((L, 3 * HIDDEN), jnp.float32)
    # Fold the 1/sqrt(head_dim) attention scale into the Q projection (identical
    # math to scaling the scores): scale both the Q weight columns and Q bias.
    scale = 1.0 / (HEAD_DIM ** 0.5)
    wqkv = wqkv.at[:, :, :HIDDEN].multiply(scale)
    bqkv = bqkv.at[:, :HIDDEN].multiply(scale)

    wo = dense((L, HIDDEN, HIDDEN))
    bo = jnp.zeros((L, HIDDEN), jnp.float32)
    ln1_g = jnp.ones((L, HIDDEN), jnp.float32)
    ln1_b = jnp.zeros((L, HIDDEN), jnp.float32)
    w1 = dense((L, HIDDEN, INTER))
    b1 = jnp.zeros((L, INTER), jnp.float32)
    w2 = dense((L, INTER, HIDDEN))
    b2 = jnp.zeros((L, HIDDEN), jnp.float32)
    ln2_g = jnp.ones((L, HIDDEN), jnp.float32)
    ln2_b = jnp.zeros((L, HIDDEN), jnp.float32)

    # Pack all tiny f32 vectors into one (2 + 8L, 96) slab: fewer operands,
    # fewer per-step DMA descriptors; each row would pad to (8,128) anyway.
    vec_w = max(3 * HIDDEN, INTER)

    def _row(v):
        return jnp.pad(v, (0, vec_w - v.shape[0]))

    rows = [_row(emb_ln_g), _row(emb_ln_b)]
    for l in range(L):
        for v in (bqkv[l], bo[l], ln1_g[l], ln1_b[l], b1[l], b2[l], ln2_g[l], ln2_b[l]):
            rows.append(_row(v))
    vecs = jnp.stack(rows).astype(jnp.float32)          # (2 + 8L, 96)

    params = {
        'word_emb': word_emb,
        'pos_emb': pos_emb,
        'type_emb': type_emb,
        'vecs': vecs,
        # matmul weights in bf16 (MXU-native on v6e/v7x, halves VMEM/DMA)
        'wqkv': wqkv.astype(jnp.bfloat16),
        'wo': wo.astype(jnp.bfloat16),
        'w1': w1.astype(jnp.bfloat16),
        'w2': w2.astype(jnp.bfloat16),
    }
    return params


# ----------------------------------- main -------------------------------------
if __name__ == "__main__":
    key = jax.random.PRNGKey(0)
    pkey, dkey = jax.random.split(key)
    params = init_params(pkey)

    B, S = 2, 8
    word_pieces = jax.random.randint(dkey, (B, S), 4, VOCAB, dtype=jnp.int32)
    word_pieces = word_pieces.at[:, 0].set(2)         # [CLS]
    word_pieces = word_pieces.at[0, -1].set(3)        # [SEP]
    word_pieces = word_pieces.at[1, 5].set(3)         # [SEP]
    word_pieces = word_pieces.at[1, 6:].set(PAD_ID)   # wordpiece padding

    fwd = jax.jit(wordpiece_transformers_forward)
    out = fwd(word_pieces, params)
    out = jax.block_until_ready(out)

    assert out.shape == (1, B, S, HIDDEN), out.shape
    assert out.dtype == jnp.float32
    assert bool(jnp.all(jnp.isfinite(out)))
    print("KERNEL_OK")
</pallas_src>

<mosaic_0001>
module attributes {stable_mosaic.version = 11 : i64} {
  func.func @kernel(%arg0: i32, %arg1: memref<8x32xf32, #tpu.memory_space<vmem>>, %arg2: memref<1x2x8xf32, #tpu.memory_space<vmem>>, %arg3: memref<18x96xf32, #tpu.memory_space<vmem>>, %arg4: memref<2x32x96xbf16, #tpu.memory_space<vmem>>, %arg5: memref<2x32x32xbf16, #tpu.memory_space<vmem>>, %arg6: memref<2x32x64xbf16, #tpu.memory_space<vmem>>, %arg7: memref<2x64x32xbf16, #tpu.memory_space<vmem>>, %arg8: memref<8x32xf32, #tpu.memory_space<vmem>>) attributes {dimension_semantics = [#tpu.dimension_semantics<parallel>], iteration_bounds = array<i64: 2>, scalar_prefetch = 0 : i64, scratch_operands = 0 : i64, tpu.core_type = #tpu.core_type<tc>, window_params = [{transform_indices = @transform_0, window_bounds = array<i64: 8, 32>}, {transform_indices = @transform_1, window_bounds = array<i64: 1, 2, 8>}, {pipeline_mode = #tpu.pipeline_mode<synchronous>, transform_indices = @transform_2, window_bounds = array<i64: 18, 96>}, {pipeline_mode = #tpu.pipeline_mode<synchronous>, transform_indices = @transform_3, window_bounds = array<i64: 2, 32, 96>}, {pipeline_mode = #tpu.pipeline_mode<synchronous>, transform_indices = @transform_4, window_bounds = array<i64: 2, 32, 32>}, {pipeline_mode = #tpu.pipeline_mode<synchronous>, transform_indices = @transform_5, window_bounds = array<i64: 2, 32, 64>}, {pipeline_mode = #tpu.pipeline_mode<synchronous>, transform_indices = @transform_6, window_bounds = array<i64: 2, 64, 32>}, {transform_indices = @transform_7, window_bounds = array<i64: 8, 32>}]} {
    %c0 = arith.constant 0 : index
    %c0_0 = arith.constant 0 : index
    %c0_1 = arith.constant 0 : index
    %0 = vector.load %arg2[%c0, %c0_0, %c0_1] : memref<1x2x8xf32, #tpu.memory_space<vmem>>, vector<1x2x8xf32>
    %1 = vector.shape_cast %0 : vector<1x2x8xf32> to vector<2x8xf32>
    %2 = vector.extract_strided_slice %1 {offsets = [0, 0], sizes = [1, 8], strides = [1, 1]} : vector<2x8xf32> to vector<1x8xf32>
    %3 = vector.extract_strided_slice %1 {offsets = [1, 0], sizes = [1, 8], strides = [1, 1]} : vector<2x8xf32> to vector<1x8xf32>
    %4 = tpu.iota {dimensions = array<i32: 0>} : vector<8x8xi32>
    %5 = arith.sitofp %4 : vector<8x8xi32> to vector<8x8xf32>
    %6 = vector.broadcast %3 : vector<1x8xf32> to vector<8x8xf32>
    %7 = arith.cmpf oge, %5, %6 : vector<8x8xf32>
    %cst = arith.constant 8.000000e+00 : f32
    %8 = vector.broadcast %cst : f32 to vector<1x8xf32>
    %9 = arith.addf %3, %8 : vector<1x8xf32>
    %10 = vector.broadcast %9 : vector<1x8xf32> to vector<8x8xf32>
    %11 = arith.cmpf olt, %5, %10 : vector<8x8xf32>
    %12 = arith.andi %7, %11 : vector<8x8xi1>
    %cst_2 = arith.constant -1.000000e+30 : f32
    %13 = vector.shape_cast %2 : vector<1x8xf32> to vector<1x8xf32>
    %14 = vector.broadcast %13 : vector<1x8xf32> to vector<8x8xf32>
    %15 = vector.broadcast %cst_2 : f32 to vector<8x8xf32>
    %16 = arith.select %12, %14, %15 : vector<8x8xi1>, vector<8x8xf32>
    %c0_3 = arith.constant 0 : index
    %c0_4 = arith.constant 0 : index
    %17 = vector.load %arg1[%c0_3, %c0_4] : memref<8x32xf32, #tpu.memory_space<vmem>>, vector<8x32xf32>
    %c0_5 = arith.constant 0 : index
    %c0_6 = arith.constant 0 : index
    %18 = vector.load %arg3[%c0_5, %c0_6] : memref<18x96xf32, #tpu.memory_space<vmem>>, vector<1x32xf32>
    %c1 = arith.constant 1 : index
    %c0_7 = arith.constant 0 : index
    %19 = vector.load %arg3[%c1, %c0_7] : memref<18x96xf32, #tpu.memory_space<vmem>>, vector<1x32xf32>
    %cst_8 = arith.constant dense<0.000000e+00> : vector<8xf32>
    %20 = vector.multi_reduction <add>, %17, %cst_8 [1] : vector<8x32xf32> to vector<8xf32>
    %21 = vector.shape_cast %20 : vector<8xf32> to vector<8x1xf32>
    %cst_9 = arith.constant 3.200000e+01 : f32
    %22 = vector.broadcast %cst_9 : f32 to vector<8x1xf32>
    %23 = arith.divf %21, %22 : vector<8x1xf32>
    %24 = vector.broadcast %23 : vector<8x1xf32> to vector<8x32xf32>
    %25 = arith.subf %17, %24 : vector<8x32xf32>
    %26 = arith.mulf %25, %25 : vector<8x32xf32>
    %cst_10 = arith.constant dense<0.000000e+00> : vector<8xf32>
    %27 = vector.multi_reduction <add>, %26, %cst_10 [1] : vector<8x32xf32> to vector<8xf32>
    %28 = vector.shape_cast %27 : vector<8xf32> to vector<8x1xf32>
    %cst_11 = arith.constant 3.200000e+01 : f32
    %29 = vector.broadcast %cst_11 : f32 to vector<8x1xf32>
    %30 = arith.divf %28, %29 : vector<8x1xf32>
    %31 = vector.broadcast %23 : vector<8x1xf32> to vector<8x32xf32>
    %32 = arith.subf %17, %31 : vector<8x32xf32>
    %cst_12 = arith.constant 9.99999996E-13 : f32
    %33 = vector.broadcast %cst_12 : f32 to vector<8x1xf32>
    %34 = arith.addf %30, %33 : vector<8x1xf32>
    %35 = math.rsqrt %34 : vector<8x1xf32>
    %36 = vector.broadcast %35 : vector<8x1xf32> to vector<8x32xf32>
    %37 = arith.mulf %32, %36 : vector<8x32xf32>
    %38 = vector.broadcast %18 : vector<1x32xf32> to vector<8x32xf32>
    %39 = arith.mulf %37, %38 : vector<8x32xf32>
    %40 = vector.broadcast %19 : vector<1x32xf32> to vector<8x32xf32>
    %41 = arith.addf %39, %40 : vector<8x32xf32>
    %c2 = arith.constant 2 : index
    %c0_13 = arith.constant 0 : index
    %42 = vector.load %arg3[%c2, %c0_13] : memref<18x96xf32, #tpu.memory_space<vmem>>, vector<1x96xf32>
    %c3 = arith.constant 3 : index
    %c0_14 = arith.constant 0 : index
    %43 = vector.load %arg3[%c3, %c0_14] : memref<18x96xf32, #tpu.memory_space<vmem>>, vector<1x32xf32>
    %c4 = arith.constant 4 : index
    %c0_15 = arith.constant 0 : index
    %44 = vector.load %arg3[%c4, %c0_15] : memref<18x96xf32, #tpu.memory_space<vmem>>, vector<1x32xf32>
    %c5 = arith.constant 5 : index
    %c0_16 = arith.constant 0 : index
    %45 = vector.load %arg3[%c5, %c0_16] : memref<18x96xf32, #tpu.memory_space<vmem>>, vector<1x32xf32>
    %c6 = arith.constant 6 : index
    %c0_17 = arith.constant 0 : index
    %46 = vector.load %arg3[%c6, %c0_17] : memref<18x96xf32, #tpu.memory_space<vmem>>, vector<1x64xf32>
    %c7 = arith.constant 7 : index
    %c0_18 = arith.constant 0 : index
    %47 = vector.load %arg3[%c7, %c0_18] : memref<18x96xf32, #tpu.memory_space<vmem>>, vector<1x32xf32>
    %c8 = arith.constant 8 : index
    %c0_19 = arith.constant 0 : index
    %48 = vector.load %arg3[%c8, %c0_19] : memref<18x96xf32, #tpu.memory_space<vmem>>, vector<1x32xf32>
    %c9 = arith.constant 9 : index
    %c0_20 = arith.constant 0 : index
    %49 = vector.load %arg3[%c9, %c0_20] : memref<18x96xf32, #tpu.memory_space<vmem>>, vector<1x32xf32>
    %50 = arith.truncf %41 : vector<8x32xf32> to vector<8x32xbf16>
    %c0_21 = arith.constant 0 : index
    %c0_22 = arith.constant 0 : index
    %c0_23 = arith.constant 0 : index
    %51 = vector.load %arg4[%c0_21, %c0_22, %c0_23] : memref<2x32x96xbf16, #tpu.memory_space<vmem>>, vector<1x32x96xbf16>
    %52 = vector.shape_cast %51 : vector<1x32x96xbf16> to vector<32x96xbf16>
    %cst_24 = arith.constant dense<0.000000e+00> : vector<8x96xf32>
    %53 = tpu.matmul %50, %52, %cst_24 {dimension_numbers = #tpu.dot_dimension_numbers<[1], [0], [0], [1], [0, 0, 1, 1], [], []>} : vector<8x32xbf16>, vector<32x96xbf16>, vector<8x96xf32> -> vector<8x96xf32>
    %54 = vector.broadcast %42 : vector<1x96xf32> to vector<8x96xf32>
    %55 = arith.addf %53, %54 : vector<8x96xf32>
    %56 = arith.truncf %55 : vector<8x96xf32> to vector<8x96xbf16>
    %57 = vector.extract_strided_slice %56 {offsets = [0, 0], sizes = [8, 16], strides = [1, 1]} : vector<8x96xbf16> to vector<8x16xbf16>
    %58 = vector.extract_strided_slice %56 {offsets = [0, 32], sizes = [8, 16], strides = [1, 1]} : vector<8x96xbf16> to vector<8x16xbf16>
    %59 = vector.extract_strided_slice %56 {offsets = [0, 64], sizes = [8, 16], strides = [1, 1]} : vector<8x96xbf16> to vector<8x16xbf16>
    %cst_25 = arith.constant dense<0.000000e+00> : vector<8x8xf32>
    %60 = tpu.matmul %57, %58, %cst_25 {dimension_numbers = #tpu.dot_dimension_numbers<[1], [1], [0], [0], [0, 0, 1, 0], [], []>} : vector<8x16xbf16>, vector<8x16xbf16>, vector<8x8xf32> -> vector<8x8xf32>
    %61 = arith.addf %60, %16 : vector<8x8xf32>
    %cst_26 = arith.constant dense<0xFF800000> : vector<8xf32>
    %62 = vector.multi_reduction <maximumf>, %61, %cst_26 [1] : vector<8x8xf32> to vector<8xf32>
    %63 = vector.shape_cast %62 : vector<8xf32> to vector<8x1xf32>
    %64 = vector.broadcast %63 : vector<8x1xf32> to vector<8x8xf32>
    %65 = arith.subf %61, %64 : vector<8x8xf32>
    %66 = math.exp %65 : vector<8x8xf32>
    %cst_27 = arith.constant dense<0.000000e+00> : vector<8xf32>
    %67 = vector.multi_reduction <add>, %66, %cst_27 [1] : vector<8x8xf32> to vector<8xf32>
    %68 = vector.shape_cast %67 : vector<8xf32> to vector<8x1xf32>
    %69 = arith.truncf %66 : vector<8x8xf32> to vector<8x8xbf16>
    %cst_28 = arith.constant dense<0.000000e+00> : vector<8x16xf32>
    %70 = tpu.matmul %69, %59, %cst_28 {dimension_numbers = #tpu.dot_dimension_numbers<[1], [0], [0], [1], [0, 0, 1, 1], [], []>} : vector<8x8xbf16>, vector<8x16xbf16>, vector<8x16xf32> -> vector<8x16xf32>
    %71 = vector.broadcast %68 : vector<8x1xf32> to vector<8x16xf32>
    %72 = arith.divf %70, %71 : vector<8x16xf32>
    %73 = vector.extract_strided_slice %56 {offsets = [0, 16], sizes = [8, 16], strides = [1, 1]} : vector<8x96xbf16> to vector<8x16xbf16>
    %74 = vector.extract_strided_slice %56 {offsets = [0, 48], sizes = [8, 16], strides = [1, 1]} : vector<8x96xbf16> to vector<8x16xbf16>
    %75 = vector.extract_strided_slice %56 {offsets = [0, 80], sizes = [8, 16], strides = [1, 1]} : vector<8x96xbf16> to vector<8x16xbf16>
    %cst_29 = arith.constant dense<0.000000e+00> : vector<8x8xf32>
    %76 = tpu.matmul %73, %74, %cst_29 {dimension_numbers = #tpu.dot_dimension_numbers<[1], [1], [0], [0], [0, 0, 1, 0], [], []>} : vector<8x16xbf16>, vector<8x16xbf16>, vector<8x8xf32> -> vector<8x8xf32>
    %77 = arith.addf %76, %16 : vector<8x8xf32>
    %cst_30 = arith.constant dense<0xFF800000> : vector<8xf32>
    %78 = vector.multi_reduction <maximumf>, %77, %cst_30 [1] : vector<8x8xf32> to vector<8xf32>
    %79 = vector.shape_cast %78 : vector<8xf32> to vector<8x1xf32>
    %80 = vector.broadcast %79 : vector<8x1xf32> to vector<8x8xf32>
    %81 = arith.subf %77, %80 : vector<8x8xf32>
    %82 = math.exp %81 : vector<8x8xf32>
    %cst_31 = arith.constant dense<0.000000e+00> : vector<8xf32>
    %83 = vector.multi_reduction <add>, %82, %cst_31 [1] : vector<8x8xf32> to vector<8xf32>
    %84 = vector.shape_cast %83 : vector<8xf32> to vector<8x1xf32>
    %85 = arith.truncf %82 : vector<8x8xf32> to vector<8x8xbf16>
    %cst_32 = arith.constant dense<0.000000e+00> : vector<8x16xf32>
    %86 = tpu.matmul %85, %75, %cst_32 {dimension_numbers = #tpu.dot_dimension_numbers<[1], [0], [0], [1], [0, 0, 1, 1], [], []>} : vector<8x8xbf16>, vector<8x16xbf16>, vector<8x16xf32> -> vector<8x16xf32>
    %87 = vector.broadcast %84 : vector<8x1xf32> to vector<8x16xf32>
    %88 = arith.divf %86, %87 : vector<8x16xf32>
    %89 = tpu.concatenate %72, %88 in 1 : vector<8x16xf32>, vector<8x16xf32> -> vector<8x32xf32>
    %90 = arith.truncf %89 : vector<8x32xf32> to vector<8x32xbf16>
    %c0_33 = arith.constant 0 : index
    %c0_34 = arith.constant 0 : index
    %c0_35 = arith.constant 0 : index
    %91 = vector.load %arg5[%c0_33, %c0_34, %c0_35] : memref<2x32x32xbf16, #tpu.memory_space<vmem>>, vector<1x32x32xbf16>
    %92 = vector.shape_cast %91 : vector<1x32x32xbf16> to vector<32x32xbf16>
    %cst_36 = arith.constant dense<0.000000e+00> : vector<8x32xf32>
    %93 = tpu.matmul %90, %92, %cst_36 {dimension_numbers = #tpu.dot_dimension_numbers<[1], [0], [0], [1], [0, 0, 1, 1], [], []>} : vector<8x32xbf16>, vector<32x32xbf16>, vector<8x32xf32> -> vector<8x32xf32>
    %94 = vector.broadcast %43 : vector<1x32xf32> to vector<8x32xf32>
    %95 = arith.addf %93, %94 : vector<8x32xf32>
    %96 = arith.addf %41, %95 : vector<8x32xf32>
    %cst_37 = arith.constant dense<0.000000e+00> : vector<8xf32>
    %97 = vector.multi_reduction <add>, %96, %cst_37 [1] : vector<8x32xf32> to vector<8xf32>
    %98 = vector.shape_cast %97 : vector<8xf32> to vector<8x1xf32>
    %cst_38 = arith.constant 3.200000e+01 : f32
    %99 = vector.broadcast %cst_38 : f32 to vector<8x1xf32>
    %100 = arith.divf %98, %99 : vector<8x1xf32>
    %101 = vector.broadcast %100 : vector<8x1xf32> to vector<8x32xf32>
    %102 = arith.subf %96, %101 : vector<8x32xf32>
    %103 = arith.mulf %102, %102 : vector<8x32xf32>
    %cst_39 = arith.constant dense<0.000000e+00> : vector<8xf32>
    %104 = vector.multi_reduction <add>, %103, %cst_39 [1] : vector<8x32xf32> to vector<8xf32>
    %105 = vector.shape_cast %104 : vector<8xf32> to vector<8x1xf32>
    %cst_40 = arith.constant 3.200000e+01 : f32
    %106 = vector.broadcast %cst_40 : f32 to vector<8x1xf32>
    %107 = arith.divf %105, %106 : vector<8x1xf32>
    %108 = vector.broadcast %100 : vector<8x1xf32> to vector<8x32xf32>
    %109 = arith.subf %96, %108 : vector<8x32xf32>
    %cst_41 = arith.constant 9.99999996E-13 : f32
    %110 = vector.broadcast %cst_41 : f32 to vector<8x1xf32>
    %111 = arith.addf %107, %110 : vector<8x1xf32>
    %112 = math.rsqrt %111 : vector<8x1xf32>
    %113 = vector.broadcast %112 : vector<8x1xf32> to vector<8x32xf32>
    %114 = arith.mulf %109, %113 : vector<8x32xf32>
    %115 = vector.broadcast %44 : vector<1x32xf32> to vector<8x32xf32>
    %116 = arith.mulf %114, %115 : vector<8x32xf32>
    %117 = vector.broadcast %45 : vector<1x32xf32> to vector<8x32xf32>
    %118 = arith.addf %116, %117 : vector<8x32xf32>
    %119 = arith.truncf %118 : vector<8x32xf32> to vector<8x32xbf16>
    %c0_42 = arith.constant 0 : index
    %c0_43 = arith.constant 0 : index
    %c0_44 = arith.constant 0 : index
    %120 = vector.load %arg6[%c0_42, %c0_43, %c0_44] : memref<2x32x64xbf16, #tpu.memory_space<vmem>>, vector<1x32x64xbf16>
    %121 = vector.shape_cast %120 : vector<1x32x64xbf16> to vector<32x64xbf16>
    %cst_45 = arith.constant dense<0.000000e+00> : vector<8x64xf32>
    %122 = tpu.matmul %119, %121, %cst_45 {dimension_numbers = #tpu.dot_dimension_numbers<[1], [0], [0], [1], [0, 0, 1, 1], [], []>} : vector<8x32xbf16>, vector<32x64xbf16>, vector<8x64xf32> -> vector<8x64xf32>
    %123 = vector.broadcast %46 : vector<1x64xf32> to vector<8x64xf32>
    %124 = arith.addf %122, %123 : vector<8x64xf32>
    %cst_46 = arith.constant 5.000000e-01 : f32
    %125 = vector.broadcast %cst_46 : f32 to vector<8x64xf32>
    %126 = arith.mulf %125, %124 : vector<8x64xf32>
    %cst_47 = arith.constant 4.471500e-02 : f32
    %127 = vector.broadcast %cst_47 : f32 to vector<8x64xf32>
    %128 = arith.mulf %127, %124 : vector<8x64xf32>
    %129 = arith.mulf %128, %124 : vector<8x64xf32>
    %130 = arith.mulf %129, %124 : vector<8x64xf32>
    %131 = arith.addf %124, %130 : vector<8x64xf32>
    %cst_48 = arith.constant 0.797884583 : f32
    %132 = vector.broadcast %cst_48 : f32 to vector<8x64xf32>
    %133 = arith.mulf %132, %131 : vector<8x64xf32>
    %134 = math.tanh %133 : vector<8x64xf32>
    %cst_49 = arith.constant 1.000000e+00 : f32
    %135 = vector.broadcast %cst_49 : f32 to vector<8x64xf32>
    %136 = arith.addf %135, %134 : vector<8x64xf32>
    %137 = arith.mulf %126, %136 : vector<8x64xf32>
    %138 = arith.truncf %137 : vector<8x64xf32> to vector<8x64xbf16>
    %c0_50 = arith.constant 0 : index
    %c0_51 = arith.constant 0 : index
    %c0_52 = arith.constant 0 : index
    %139 = vector.load %arg7[%c0_50, %c0_51, %c0_52] : memref<2x64x32xbf16, #tpu.memory_space<vmem>>, vector<1x64x32xbf16>
    %140 = vector.shape_cast %139 : vector<1x64x32xbf16> to vector<64x32xbf16>
    %cst_53 = arith.constant dense<0.000000e+00> : vector<8x32xf32>
    %141 = tpu.matmul %138, %140, %cst_53 {dimension_numbers = #tpu.dot_dimension_numbers<[1], [0], [0], [1], [0, 0, 1, 1], [], []>} : vector<8x64xbf16>, vector<64x32xbf16>, vector<8x32xf32> -> vector<8x32xf32>
    %142 = vector.broadcast %47 : vector<1x32xf32> to vector<8x32xf32>
    %143 = arith.addf %141, %142 : vector<8x32xf32>
    %144 = arith.addf %118, %143 : vector<8x32xf32>
    %cst_54 = arith.constant dense<0.000000e+00> : vector<8xf32>
    %145 = vector.multi_reduction <add>, %144, %cst_54 [1] : vector<8x32xf32> to vector<8xf32>
    %146 = vector.shape_cast %145 : vector<8xf32> to vector<8x1xf32>
    %cst_55 = arith.constant 3.200000e+01 : f32
    %147 = vector.broadcast %cst_55 : f32 to vector<8x1xf32>
    %148 = arith.divf %146, %147 : vector<8x1xf32>
    %149 = vector.broadcast %148 : vector<8x1xf32> to vector<8x32xf32>
    %150 = arith.subf %144, %149 : vector<8x32xf32>
    %151 = arith.mulf %150, %150 : vector<8x32xf32>
    %cst_56 = arith.constant dense<0.000000e+00> : vector<8xf32>
    %152 = vector.multi_reduction <add>, %151, %cst_56 [1] : vector<8x32xf32> to vector<8xf32>
    %153 = vector.shape_cast %152 : vector<8xf32> to vector<8x1xf32>
    %cst_57 = arith.constant 3.200000e+01 : f32
    %154 = vector.broadcast %cst_57 : f32 to vector<8x1xf32>
    %155 = arith.divf %153, %154 : vector<8x1xf32>
    %156 = vector.broadcast %148 : vector<8x1xf32> to vector<8x32xf32>
    %157 = arith.subf %144, %156 : vector<8x32xf32>
    %cst_58 = arith.constant 9.99999996E-13 : f32
    %158 = vector.broadcast %cst_58 : f32 to vector<8x1xf32>
    %159 = arith.addf %155, %158 : vector<8x1xf32>
    %160 = math.rsqrt %159 : vector<8x1xf32>
    %161 = vector.broadcast %160 : vector<8x1xf32> to vector<8x32xf32>
    %162 = arith.mulf %157, %161 : vector<8x32xf32>
    %163 = vector.broadcast %48 : vector<1x32xf32> to vector<8x32xf32>
    %164 = arith.mulf %162, %163 : vector<8x32xf32>
    %165 = vector.broadcast %49 : vector<1x32xf32> to vector<8x32xf32>
    %166 = arith.addf %164, %165 : vector<8x32xf32>
    %c10 = arith.constant 10 : index
    %c0_59 = arith.constant 0 : index
    %167 = vector.load %arg3[%c10, %c0_59] : memref<18x96xf32, #tpu.memory_space<vmem>>, vector<1x96xf32>
    %c11 = arith.constant 11 : index
    %c0_60 = arith.constant 0 : index
    %168 = vector.load %arg3[%c11, %c0_60] : memref<18x96xf32, #tpu.memory_space<vmem>>, vector<1x32xf32>
    %c12 = arith.constant 12 : index
    %c0_61 = arith.constant 0 : index
    %169 = vector.load %arg3[%c12, %c0_61] : memref<18x96xf32, #tpu.memory_space<vmem>>, vector<1x32xf32>
    %c13 = arith.constant 13 : index
    %c0_62 = arith.constant 0 : index
    %170 = vector.load %arg3[%c13, %c0_62] : memref<18x96xf32, #tpu.memory_space<vmem>>, vector<1x32xf32>
    %c14 = arith.constant 14 : index
    %c0_63 = arith.constant 0 : index
    %171 = vector.load %arg3[%c14, %c0_63] : memref<18x96xf32, #tpu.memory_space<vmem>>, vector<1x64xf32>
    %c15 = arith.constant 15 : index
    %c0_64 = arith.constant 0 : index
    %172 = vector.load %arg3[%c15, %c0_64] : memref<18x96xf32, #tpu.memory_space<vmem>>, vector<1x32xf32>
    %c16 = arith.constant 16 : index
    %c0_65 = arith.constant 0 : index
    %173 = vector.load %arg3[%c16, %c0_65] : memref<18x96xf32, #tpu.memory_space<vmem>>, vector<1x32xf32>
    %c17 = arith.constant 17 : index
    %c0_66 = arith.constant 0 : index
    %174 = vector.load %arg3[%c17, %c0_66] : memref<18x96xf32, #tpu.memory_space<vmem>>, vector<1x32xf32>
    %175 = arith.truncf %166 : vector<8x32xf32> to vector<8x32xbf16>
    %c1_67 = arith.constant 1 : index
    %c0_68 = arith.constant 0 : index
    %c0_69 = arith.constant 0 : index
    %176 = vector.load %arg4[%c1_67, %c0_68, %c0_69] : memref<2x32x96xbf16, #tpu.memory_space<vmem>>, vector<1x32x96xbf16>
    %177 = vector.shape_cast %176 : vector<1x32x96xbf16> to vector<32x96xbf16>
    %cst_70 = arith.constant dense<0.000000e+00> : vector<8x96xf32>
    %178 = tpu.matmul %175, %177, %cst_70 {dimension_numbers = #tpu.dot_dimension_numbers<[1], [0], [0], [1], [0, 0, 1, 1], [], []>} : vector<8x32xbf16>, vector<32x96xbf16>, vector<8x96xf32> -> vector<8x96xf32>
    %179 = vector.broadcast %167 : vector<1x96xf32> to vector<8x96xf32>
    %180 = arith.addf %178, %179 : vector<8x96xf32>
    %181 = arith.truncf %180 : vector<8x96xf32> to vector<8x96xbf16>
    %182 = vector.extract_strided_slice %181 {offsets = [0, 0], sizes = [8, 16], strides = [1, 1]} : vector<8x96xbf16> to vector<8x16xbf16>
    %183 = vector.extract_strided_slice %181 {offsets = [0, 32], sizes = [8, 16], strides = [1, 1]} : vector<8x96xbf16> to vector<8x16xbf16>
    %184 = vector.extract_strided_slice %181 {offsets = [0, 64], sizes = [8, 16], strides = [1, 1]} : vector<8x96xbf16> to vector<8x16xbf16>
    %cst_71 = arith.constant dense<0.000000e+00> : vector<8x8xf32>
    %185 = tpu.matmul %182, %183, %cst_71 {dimension_numbers = #tpu.dot_dimension_numbers<[1], [1], [0], [0], [0, 0, 1, 0], [], []>} : vector<8x16xbf16>, vector<8x16xbf16>, vector<8x8xf32> -> vector<8x8xf32>
    %186 = arith.addf %185, %16 : vector<8x8xf32>
    %cst_72 = arith.constant dense<0xFF800000> : vector<8xf32>
    %187 = vector.multi_reduction <maximumf>, %186, %cst_72 [1] : vector<8x8xf32> to vector<8xf32>
    %188 = vector.shape_cast %187 : vector<8xf32> to vector<8x1xf32>
    %189 = vector.broadcast %188 : vector<8x1xf32> to vector<8x8xf32>
    %190 = arith.subf %186, %189 : vector<8x8xf32>
    %191 = math.exp %190 : vector<8x8xf32>
    %cst_73 = arith.constant dense<0.000000e+00> : vector<8xf32>
    %192 = vector.multi_reduction <add>, %191, %cst_73 [1] : vector<8x8xf32> to vector<8xf32>
    %193 = vector.shape_cast %192 : vector<8xf32> to vector<8x1xf32>
    %194 = arith.truncf %191 : vector<8x8xf32> to vector<8x8xbf16>
    %cst_74 = arith.constant dense<0.000000e+00> : vector<8x16xf32>
    %195 = tpu.matmul %194, %184, %cst_74 {dimension_numbers = #tpu.dot_dimension_numbers<[1], [0], [0], [1], [0, 0, 1, 1], [], []>} : vector<8x8xbf16>, vector<8x16xbf16>, vector<8x16xf32> -> vector<8x16xf32>
    %196 = vector.broadcast %193 : vector<8x1xf32> to vector<8x16xf32>
    %197 = arith.divf %195, %196 : vector<8x16xf32>
    %198 = vector.extract_strided_slice %181 {offsets = [0, 16], sizes = [8, 16], strides = [1, 1]} : vector<8x96xbf16> to vector<8x16xbf16>
    %199 = vector.extract_strided_slice %181 {offsets = [0, 48], sizes = [8, 16], strides = [1, 1]} : vector<8x96xbf16> to vector<8x16xbf16>
    %200 = vector.extract_strided_slice %181 {offsets = [0, 80], sizes = [8, 16], strides = [1, 1]} : vector<8x96xbf16> to vector<8x16xbf16>
    %cst_75 = arith.constant dense<0.000000e+00> : vector<8x8xf32>
    %201 = tpu.matmul %198, %199, %cst_75 {dimension_numbers = #tpu.dot_dimension_numbers<[1], [1], [0], [0], [0, 0, 1, 0], [], []>} : vector<8x16xbf16>, vector<8x16xbf16>, vector<8x8xf32> -> vector<8x8xf32>
    %202 = arith.addf %201, %16 : vector<8x8xf32>
    %cst_76 = arith.constant dense<0xFF800000> : vector<8xf32>
    %203 = vector.multi_reduction <maximumf>, %202, %cst_76 [1] : vector<8x8xf32> to vector<8xf32>
    %204 = vector.shape_cast %203 : vector<8xf32> to vector<8x1xf32>
    %205 = vector.broadcast %204 : vector<8x1xf32> to vector<8x8xf32>
    %206 = arith.subf %202, %205 : vector<8x8xf32>
    %207 = math.exp %206 : vector<8x8xf32>
    %cst_77 = arith.constant dense<0.000000e+00> : vector<8xf32>
    %208 = vector.multi_reduction <add>, %207, %cst_77 [1] : vector<8x8xf32> to vector<8xf32>
    %209 = vector.shape_cast %208 : vector<8xf32> to vector<8x1xf32>
    %210 = arith.truncf %207 : vector<8x8xf32> to vector<8x8xbf16>
    %cst_78 = arith.constant dense<0.000000e+00> : vector<8x16xf32>
    %211 = tpu.matmul %210, %200, %cst_78 {dimension_numbers = #tpu.dot_dimension_numbers<[1], [0], [0], [1], [0, 0, 1, 1], [], []>} : vector<8x8xbf16>, vector<8x16xbf16>, vector<8x16xf32> -> vector<8x16xf32>
    %212 = vector.broadcast %209 : vector<8x1xf32> to vector<8x16xf32>
    %213 = arith.divf %211, %212 : vector<8x16xf32>
    %214 = tpu.concatenate %197, %213 in 1 : vector<8x16xf32>, vector<8x16xf32> -> vector<8x32xf32>
    %215 = arith.truncf %214 : vector<8x32xf32> to vector<8x32xbf16>
    %c1_79 = arith.constant 1 : index
    %c0_80 = arith.constant 0 : index
    %c0_81 = arith.constant 0 : index
    %216 = vector.load %arg5[%c1_79, %c0_80, %c0_81] : memref<2x32x32xbf16, #tpu.memory_space<vmem>>, vector<1x32x32xbf16>
    %217 = vector.shape_cast %216 : vector<1x32x32xbf16> to vector<32x32xbf16>
    %cst_82 = arith.constant dense<0.000000e+00> : vector<8x32xf32>
    %218 = tpu.matmul %215, %217, %cst_82 {dimension_numbers = #tpu.dot_dimension_numbers<[1], [0], [0], [1], [0, 0, 1, 1], [], []>} : vector<8x32xbf16>, vector<32x32xbf16>, vector<8x32xf32> -> vector<8x32xf32>
    %219 = vector.broadcast %168 : vector<1x32xf32> to vector<8x32xf32>
    %220 = arith.addf %218, %219 : vector<8x32xf32>
    %221 = arith.addf %166, %220 : vector<8x32xf32>
    %cst_83 = arith.constant dense<0.000000e+00> : vector<8xf32>
    %222 = vector.multi_reduction <add>, %221, %cst_83 [1] : vector<8x32xf32> to vector<8xf32>
    %223 = vector.shape_cast %222 : vector<8xf32> to vector<8x1xf32>
    %cst_84 = arith.constant 3.200000e+01 : f32
    %224 = vector.broadcast %cst_84 : f32 to vector<8x1xf32>
    %225 = arith.divf %223, %224 : vector<8x1xf32>
    %226 = vector.broadcast %225 : vector<8x1xf32> to vector<8x32xf32>
    %227 = arith.subf %221, %226 : vector<8x32xf32>
    %228 = arith.mulf %227, %227 : vector<8x32xf32>
    %cst_85 = arith.constant dense<0.000000e+00> : vector<8xf32>
    %229 = vector.multi_reduction <add>, %228, %cst_85 [1] : vector<8x32xf32> to vector<8xf32>
    %230 = vector.shape_cast %229 : vector<8xf32> to vector<8x1xf32>
    %cst_86 = arith.constant 3.200000e+01 : f32
    %231 = vector.broadcast %cst_86 : f32 to vector<8x1xf32>
    %232 = arith.divf %230, %231 : vector<8x1xf32>
    %233 = vector.broadcast %225 : vector<8x1xf32> to vector<8x32xf32>
    %234 = arith.subf %221, %233 : vector<8x32xf32>
    %cst_87 = arith.constant 9.99999996E-13 : f32
    %235 = vector.broadcast %cst_87 : f32 to vector<8x1xf32>
    %236 = arith.addf %232, %235 : vector<8x1xf32>
    %237 = math.rsqrt %236 : vector<8x1xf32>
    %238 = vector.broadcast %237 : vector<8x1xf32> to vector<8x32xf32>
    %239 = arith.mulf %234, %238 : vector<8x32xf32>
    %240 = vector.broadcast %169 : vector<1x32xf32> to vector<8x32xf32>
    %241 = arith.mulf %239, %240 : vector<8x32xf32>
    %242 = vector.broadcast %170 : vector<1x32xf32> to vector<8x32xf32>
    %243 = arith.addf %241, %242 : vector<8x32xf32>
    %244 = arith.truncf %243 : vector<8x32xf32> to vector<8x32xbf16>
    %c1_88 = arith.constant 1 : index
    %c0_89 = arith.constant 0 : index
    %c0_90 = arith.constant 0 : index
    %245 = vector.load %arg6[%c1_88, %c0_89, %c0_90] : memref<2x32x64xbf16, #tpu.memory_space<vmem>>, vector<1x32x64xbf16>
    %246 = vector.shape_cast %245 : vector<1x32x64xbf16> to vector<32x64xbf16>
    %cst_91 = arith.constant dense<0.000000e+00> : vector<8x64xf32>
    %247 = tpu.matmul %244, %246, %cst_91 {dimension_numbers = #tpu.dot_dimension_numbers<[1], [0], [0], [1], [0, 0, 1, 1], [], []>} : vector<8x32xbf16>, vector<32x64xbf16>, vector<8x64xf32> -> vector<8x64xf32>
    %248 = vector.broadcast %171 : vector<1x64xf32> to vector<8x64xf32>
    %249 = arith.addf %247, %248 : vector<8x64xf32>
    %cst_92 = arith.constant 5.000000e-01 : f32
    %250 = vector.broadcast %cst_92 : f32 to vector<8x64xf32>
    %251 = arith.mulf %250, %249 : vector<8x64xf32>
    %cst_93 = arith.constant 4.471500e-02 : f32
    %252 = vector.broadcast %cst_93 : f32 to vector<8x64xf32>
    %253 = arith.mulf %252, %249 : vector<8x64xf32>
    %254 = arith.mulf %253, %249 : vector<8x64xf32>
    %255 = arith.mulf %254, %249 : vector<8x64xf32>
    %256 = arith.addf %249, %255 : vector<8x64xf32>
    %cst_94 = arith.constant 0.797884583 : f32
    %257 = vector.broadcast %cst_94 : f32 to vector<8x64xf32>
    %258 = arith.mulf %257, %256 : vector<8x64xf32>
    %259 = math.tanh %258 : vector<8x64xf32>
    %cst_95 = arith.constant 1.000000e+00 : f32
    %260 = vector.broadcast %cst_95 : f32 to vector<8x64xf32>
    %261 = arith.addf %260, %259 : vector<8x64xf32>
    %262 = arith.mulf %251, %261 : vector<8x64xf32>
    %263 = arith.truncf %262 : vector<8x64xf32> to vector<8x64xbf16>
    %c1_96 = arith.constant 1 : index
    %c0_97 = arith.constant 0 : index
    %c0_98 = arith.constant 0 : index
    %264 = vector.load %arg7[%c1_96, %c0_97, %c0_98] : memref<2x64x32xbf16, #tpu.memory_space<vmem>>, vector<1x64x32xbf16>
    %265 = vector.shape_cast %264 : vector<1x64x32xbf16> to vector<64x32xbf16>
    %cst_99 = arith.constant dense<0.000000e+00> : vector<8x32xf32>
    %266 = tpu.matmul %263, %265, %cst_99 {dimension_numbers = #tpu.dot_dimension_numbers<[1], [0], [0], [1], [0, 0, 1, 1], [], []>} : vector<8x64xbf16>, vector<64x32xbf16>, vector<8x32xf32> -> vector<8x32xf32>
    %267 = vector.broadcast %172 : vector<1x32xf32> to vector<8x32xf32>
    %268 = arith.addf %266, %267 : vector<8x32xf32>
    %269 = arith.addf %243, %268 : vector<8x32xf32>
    %cst_100 = arith.constant dense<0.000000e+00> : vector<8xf32>
    %270 = vector.multi_reduction <add>, %269, %cst_100 [1] : vector<8x32xf32> to vector<8xf32>
    %271 = vector.shape_cast %270 : vector<8xf32> to vector<8x1xf32>
    %cst_101 = arith.constant 3.200000e+01 : f32
    %272 = vector.broadcast %cst_101 : f32 to vector<8x1xf32>
    %273 = arith.divf %271, %272 : vector<8x1xf32>
    %274 = vector.broadcast %273 : vector<8x1xf32> to vector<8x32xf32>
    %275 = arith.subf %269, %274 : vector<8x32xf32>
    %276 = arith.mulf %275, %275 : vector<8x32xf32>
    %cst_102 = arith.constant dense<0.000000e+00> : vector<8xf32>
    %277 = vector.multi_reduction <add>, %276, %cst_102 [1] : vector<8x32xf32> to vector<8xf32>
    %278 = vector.shape_cast %277 : vector<8xf32> to vector<8x1xf32>
    %cst_103 = arith.constant 3.200000e+01 : f32
    %279 = vector.broadcast %cst_103 : f32 to vector<8x1xf32>
    %280 = arith.divf %278, %279 : vector<8x1xf32>
    %281 = vector.broadcast %273 : vector<8x1xf32> to vector<8x32xf32>
    %282 = arith.subf %269, %281 : vector<8x32xf32>
    %cst_104 = arith.constant 9.99999996E-13 : f32
    %283 = vector.broadcast %cst_104 : f32 to vector<8x1xf32>
    %284 = arith.addf %280, %283 : vector<8x1xf32>
    %285 = math.rsqrt %284 : vector<8x1xf32>
    %286 = vector.broadcast %285 : vector<8x1xf32> to vector<8x32xf32>
    %287 = arith.mulf %282, %286 : vector<8x32xf32>
    %288 = vector.broadcast %173 : vector<1x32xf32> to vector<8x32xf32>
    %289 = arith.mulf %287, %288 : vector<8x32xf32>
    %290 = vector.broadcast %174 : vector<1x32xf32> to vector<8x32xf32>
    %291 = arith.addf %289, %290 : vector<8x32xf32>
    %c0_105 = arith.constant 0 : index
    %c0_106 = arith.constant 0 : index
    %292 = vector.load %arg8[%c0_105, %c0_106] : memref<8x32xf32, #tpu.memory_space<vmem>>, vector<8x32xf32>
    tpu.vector_store %arg8[%c0_105, %c0_106], %291 {strides = array<i32>} : memref<8x32xf32, #tpu.memory_space<vmem>>, vector<8x32xf32>,
    return
  }
  func.func @transform_0(%arg0: i32) -> (i32, i32) {
    %c0_i32 = arith.constant 0 : i32
    %c0_i32_0 = arith.constant 0 : i32
    return %arg0, %c0_i32 : i32, i32
  }
  func.func @transform_1(%arg0: i32) -> (i32, i32, i32) {
    %c0_i32 = arith.constant 0 : i32
    %c0_i32_0 = arith.constant 0 : i32
    %c0_i32_1 = arith.constant 0 : i32
    return %arg0, %c0_i32, %c0_i32_0 : i32, i32, i32
  }
  func.func @transform_2(%arg0: i32) -> (i32, i32) {
    %c0_i32 = arith.constant 0 : i32
    %c0_i32_0 = arith.constant 0 : i32
    %c0_i32_1 = arith.constant 0 : i32
    return %c0_i32, %c0_i32_0 : i32, i32
  }
  func.func @transform_3(%arg0: i32) -> (i32, i32, i32) {
    %c0_i32 = arith.constant 0 : i32
    %c0_i32_0 = arith.constant 0 : i32
    %c0_i32_1 = arith.constant 0 : i32
    %c0_i32_2 = arith.constant 0 : i32
    return %c0_i32, %c0_i32_0, %c0_i32_1 : i32, i32, i32
  }
  func.func @transform_4(%arg0: i32) -> (i32, i32, i32) {
    %c0_i32 = arith.constant 0 : i32
    %c0_i32_0 = arith.constant 0 : i32
    %c0_i32_1 = arith.constant 0 : i32
    %c0_i32_2 = arith.constant 0 : i32
    return %c0_i32, %c0_i32_0, %c0_i32_1 : i32, i32, i32
  }
  func.func @transform_5(%arg0: i32) -> (i32, i32, i32) {
    %c0_i32 = arith.constant 0 : i32
    %c0_i32_0 = arith.constant 0 : i32
    %c0_i32_1 = arith.constant 0 : i32
    %c0_i32_2 = arith.constant 0 : i32
    return %c0_i32, %c0_i32_0, %c0_i32_1 : i32, i32, i32
  }
  func.func @transform_6(%arg0: i32) -> (i32, i32, i32) {
    %c0_i32 = arith.constant 0 : i32
    %c0_i32_0 = arith.constant 0 : i32
    %c0_i32_1 = arith.constant 0 : i32
    %c0_i32_2 = arith.constant 0 : i32
    return %c0_i32, %c0_i32_0, %c0_i32_1 : i32, i32, i32
  }
  func.func @transform_7(%arg0: i32) -> (i32, i32) {
    %c0_i32 = arith.constant 0 : i32
    %c0_i32_0 = arith.constant 0 : i32
    return %arg0, %c0_i32 : i32, i32
  }
}

</mosaic_0001>

<llo_original>
// kernel: wordpiece_transformers_forward.1
$region0: #{wordpiece_transformers_forward.1}
  #allocation0 [shape = 'u32[]', space=smem, size = 0x4, offset = 0x4, fixed_abs, tag = 'smem constant byte address 0x4 - core index']
  #allocation1 [shape = 'u32[144,128]{1,0:T(1,128)}', space=vmem, size = 0x12000, scoped, tag = 'internal scratch']
  %s0 = inlined_call_operand.vmem [shape: f32[16,32], index: 0, kind: input, shape index: {}]
  %s1 = inlined_call_operand.vmem [shape: f32[2,2,8], index: 1, kind: input, shape index: {}]
  %s2 = inlined_call_operand.vmem [shape: f32[18,96], index: 2, kind: input, shape index: {}]
  %s3 = inlined_call_operand.vmem [shape: bf16[2,32,96], index: 3, kind: input, shape index: {}]
  %s4 = inlined_call_operand.vmem [shape: bf16[2,32,32], index: 4, kind: input, shape index: {}]
  %s5 = inlined_call_operand.vmem [shape: bf16[2,32,64], index: 5, kind: input, shape index: {}]
  %s6 = inlined_call_operand.vmem [shape: bf16[2,64,32], index: 6, kind: input, shape index: {}]
  %s7 = inlined_call_operand.hbm [shape: f32[16,32], index: 7, kind: output, shape index: {}]
  %s8 = sld [smem:[#allocation0]]
  $region61: #{wordpiece_transformers_forward.1} parent=0
    _
  %s10 = ssub.s32 1, %s8
  %s11 = scalar_select 0, %s10, %s8
  $region1: #{wordpiece_transformers_forward.1} parent=0
    #allocation2 [shape = 'u8[8192]{0}', space=vmem, size = 0x2000, scoped, tag = 'output window, operand 0']
    #allocation3 [shape = 's32[2]{0}', space=sflag, size = 0x8, scoped, tag = 'scoped memory for wordpiece_transformers_forward.1']
    %12 = vsyncpa [#allocation3], 0
    %s13 = scalar_lea.sflag [#allocation3], 1
    %14 = vsyncpa %s13, 0
    loop: start=0, step=1, limit=4
    $region2: #{wordpiece_transformers_forward.1} parent=1 // loop_pre_header
      _
    $region3: #{wordpiece_transformers_forward.1} parent=1 // loop_header
      %s16 = sphi 0, %s20
      %p17 = scmp.ge.s32.totalorder %s16, 4
      %s26 = sphi 0, %s28
      %s29 = sphi 0, %s26
      %s30 = sphi 0, %s29
      %s46 = sphi 0, %s30
      %s52 = sphi 0, %s54
      %s55 = sphi 0, %s52
      %s56 = sphi 0, %s55
      %s72 = sphi 0, %s56
      %s76 = sphi 0, %s76
      %s78 = sphi 0, %s76
      %s79 = sphi 0, %s78
      %s93 = sphi 0, %s79
      %s97 = sphi 0, %s97
      %s99 = sphi 0, %s97
      %s100 = sphi 0, %s99
      %s114 = sphi 0, %s100
      %s118 = sphi 0, %s118
      %s120 = sphi 0, %s118
      %s121 = sphi 0, %s120
      %s135 = sphi 0, %s121
      %s139 = sphi 0, %s139
      %s141 = sphi 0, %s139
      %s142 = sphi 0, %s141
      %s156 = sphi 0, %s142
      %s160 = sphi 0, %s160
      %s162 = sphi 0, %s160
      %s163 = sphi 0, %s162
      %s177 = sphi 0, %s163
      %s183 = sphi 0, %s185
      %s186 = sphi 0, %s183
      %s187 = sphi 0, %s186
      %s203 = sphi 0, %s187
    $region4: #{wordpiece_transformers_forward.1} parent=1 // loop_header_branch
      %19 = sbr.rel (%p17) target = $region8
    $region5: #{wordpiece_transformers_forward.1} parent=1 // loop_body
      %s21 = ssub.s32 %s16, 1
      %s22 = ssub.s32 %s16, 2
      %s23 = sadd.s32 %s16, 1
      %s24 = ssub.s32 %s16, %s23
      %p25 = scmp.eq.s32.totalorder %s24, 0
      %s27 = sadd.s32 %s26, 1
      %s28 = scalar_select %p25, %s26, %s27
      %p31 = pneg %p25
      %p32 = scmp.eq.s32.totalorder %s16, 1
      %p33 = por %p31, %p32
      %p34 = scmp.ne.s32.totalorder %s26, %s29
      %p35 = scmp.eq.s32.totalorder %s16, 0
      %p36 = por %p34, %p35
      %p37 = scmp.ne.s32.totalorder %s26, %s29
      %p38 = scmp.eq.s32.totalorder %s21, 1
      %p39 = por %p37, %p38
      %p40 = scmp.ne.s32.totalorder %s29, %s30
      %p41 = scmp.eq.s32.totalorder %s21, 0
      %p42 = por %p40, %p41
      %p43 = scmp.ne.s32.totalorder %s29, %s30
      %p44 = scmp.eq.s32.totalorder %s22, 1
      %p45 = por %p43, %p44
      %p47 = scmp.ne.s32.totalorder %s30, %s46
      %p48 = scmp.eq.s32.totalorder %s22, 0
      %p49 = por %p47, %p48
      %s50 = ssub.s32 %s16, %s23
      %p51 = scmp.eq.s32.totalorder %s50, 0
      %s53 = sadd.s32 %s52, 1
      %s54 = scalar_select %p51, %s52, %s53
      %p57 = pneg %p51
      %p58 = scmp.eq.s32.totalorder %s16, 1
      %p59 = por %p57, %p58
      %p60 = scmp.ne.s32.totalorder %s52, %s55
      %p61 = scmp.eq.s32.totalorder %s16, 0
      %p62 = por %p60, %p61
      %p63 = scmp.ne.s32.totalorder %s52, %s55
      %p64 = scmp.eq.s32.totalorder %s21, 1
      %p65 = por %p63, %p64
      %p66 = scmp.ne.s32.totalorder %s55, %s56
      %p67 = scmp.eq.s32.totalorder %s21, 0
      %p68 = por %p66, %p67
      %p69 = scmp.ne.s32.totalorder %s55, %s56
      %p70 = scmp.eq.s32.totalorder %s22, 1
      %p71 = por %p69, %p70
      %p73 = scmp.ne.s32.totalorder %s56, %s72
      %p74 = scmp.eq.s32.totalorder %s22, 0
      %p75 = por %p73, %p74
      %s77 = sadd.s32 %s76, 1
      %p80 = scmp.eq.s32.totalorder %s16, 1
      %p81 = scmp.ne.s32.totalorder %s76, %s78
      %p82 = scmp.eq.s32.totalorder %s16, 0
      %p83 = por %p81, %p82
      %p84 = scmp.ne.s32.totalorder %s76, %s78
      %p85 = scmp.eq.s32.totalorder %s21, 1
      %p86 = por %p84, %p85
      %p87 = scmp.ne.s32.totalorder %s78, %s79
      %p88 = scmp.eq.s32.totalorder %s21, 0
      %p89 = por %p87, %p88
      %p90 = scmp.ne.s32.totalorder %s78, %s79
      %p91 = scmp.eq.s32.totalorder %s22, 1
      %p92 = por %p90, %p91
      %p94 = scmp.ne.s32.totalorder %s79, %s93
      %p95 = scmp.eq.s32.totalorder %s22, 0
      %p96 = por %p94, %p95
      %s98 = sadd.s32 %s97, 1
      %p101 = scmp.eq.s32.totalorder %s16, 1
      %p102 = scmp.ne.s32.totalorder %s97, %s99
      %p103 = scmp.eq.s32.totalorder %s16, 0
      %p104 = por %p102, %p103
      %p105 = scmp.ne.s32.totalorder %s97, %s99
      %p106 = scmp.eq.s32.totalorder %s21, 1
      %p107 = por %p105, %p106
      %p108 = scmp.ne.s32.totalorder %s99, %s100
      %p109 = scmp.eq.s32.totalorder %s21, 0
      %p110 = por %p108, %p109
      %p111 = scmp.ne.s32.totalorder %s99, %s100
      %p112 = scmp.eq.s32.totalorder %s22, 1
      %p113 = por %p111, %p112
      %p115 = scmp.ne.s32.totalorder %s100, %s114
      %p116 = scmp.eq.s32.totalorder %s22, 0
      %p117 = por %p115, %p116
      %s119 = sadd.s32 %s118, 1
      %p122 = scmp.eq.s32.totalorder %s16, 1
      %p123 = scmp.ne.s32.totalorder %s118, %s120
      %p124 = scmp.eq.s32.totalorder %s16, 0
      %p125 = por %p123, %p124
      %p126 = scmp.ne.s32.totalorder %s118, %s120
      %p127 = scmp.eq.s32.totalorder %s21, 1
      %p128 = por %p126, %p127
      %p129 = scmp.ne.s32.totalorder %s120, %s121
      %p130 = scmp.eq.s32.totalorder %s21, 0
      %p131 = por %p129, %p130
      %p132 = scmp.ne.s32.totalorder %s120, %s121
      %p133 = scmp.eq.s32.totalorder %s22, 1
      %p134 = por %p132, %p133
      %p136 = scmp.ne.s32.totalorder %s121, %s135
      %p137 = scmp.eq.s32.totalorder %s22, 0
      %p138 = por %p136, %p137
      %s140 = sadd.s32 %s139, 1
      %p143 = scmp.eq.s32.totalorder %s16, 1
      %p144 = scmp.ne.s32.totalorder %s139, %s141
      %p145 = scmp.eq.s32.totalorder %s16, 0
      %p146 = por %p144, %p145
      %p147 = scmp.ne.s32.totalorder %s139, %s141
      %p148 = scmp.eq.s32.totalorder %s21, 1
      %p149 = por %p147, %p148
      %p150 = scmp.ne.s32.totalorder %s141, %s142
      %p151 = scmp.eq.s32.totalorder %s21, 0
      %p152 = por %p150, %p151
      %p153 = scmp.ne.s32.totalorder %s141, %s142
      %p154 = scmp.eq.s32.totalorder %s22, 1
      %p155 = por %p153, %p154
      %p157 = scmp.ne.s32.totalorder %s142, %s156
      %p158 = scmp.eq.s32.totalorder %s22, 0
      %p159 = por %p157, %p158
      %s161 = sadd.s32 %s160, 1
      %p164 = scmp.eq.s32.totalorder %s16, 1
      %p165 = scmp.ne.s32.totalorder %s160, %s162
      %p166 = scmp.eq.s32.totalorder %s16, 0
      %p167 = por %p165, %p166
      %p168 = scmp.ne.s32.totalorder %s160, %s162
      %p169 = scmp.eq.s32.totalorder %s21, 1
      %p170 = por %p168, %p169
      %p171 = scmp.ne.s32.totalorder %s162, %s163
      %p172 = scmp.eq.s32.totalorder %s21, 0
      %p173 = por %p171, %p172
      %p174 = scmp.ne.s32.totalorder %s162, %s163
      %p175 = scmp.eq.s32.totalorder %s22, 1
      %p176 = por %p174, %p175
      %p178 = scmp.ne.s32.totalorder %s163, %s177
      %p179 = scmp.eq.s32.totalorder %s22, 0
      %p180 = por %p178, %p179
      %s181 = ssub.s32 %s16, %s23
      %p182 = scmp.eq.s32.totalorder %s181, 0
      %s184 = sadd.s32 %s183, 1
      %s185 = scalar_select %p182, %s183, %s184
      %p188 = pneg %p182
      %p189 = scmp.eq.s32.totalorder %s16, 1
      %p190 = por %p188, %p189
      %p191 = scmp.ne.s32.totalorder %s183, %s186
      %p192 = scmp.eq.s32.totalorder %s16, 0
      %p193 = por %p191, %p192
      %p194 = scmp.ne.s32.totalorder %s183, %s186
      %p195 = scmp.eq.s32.totalorder %s21, 1
      %p196 = por %p194, %p195
      %p197 = scmp.ne.s32.totalorder %s186, %s187
      %p198 = scmp.eq.s32.totalorder %s21, 0
      %p199 = por %p197, %p198
      %p200 = scmp.ne.s32.totalorder %s186, %s187
      %p201 = scmp.eq.s32.totalorder %s22, 1
      %p202 = por %p200, %p201
      %p204 = scmp.ne.s32.totalorder %s187, %s203
      %p205 = scmp.eq.s32.totalorder %s22, 0
      %p206 = por %p204, %p205
      %p207 = scmp.le.s32.totalorder 1, %s16
      %p208 = scmp.lt.s32.totalorder %s16, 3
      %p209 = pnand %p207, %p208
      %p210 = pneg %p209
      // Predicated region
      $region9: #{wordpiece_transformers_forward.1} parent=5 // pred_check
        _
      $region10: #{wordpiece_transformers_forward.1} parent=5 // pred_check_branch
        %212 = sbr.rel (%p209) target = $region12
      $region11: #{wordpiece_transformers_forward.1} parent=5 // pred_region
        %s213 = ssub.s32 %s16, 1
        // Predicated region
        $region13: #{wordpiece_transformers_forward.1} parent=11 // pred_check
          %p214 = pneg %p89
        $region14: #{wordpiece_transformers_forward.1} parent=11 // pred_check_branch
          %216 = sbr.rel (%p214) target = $region16
        $region15: #{wordpiece_transformers_forward.1} parent=11 // pred_region
          _
        $region16: #{wordpiece_transformers_forward.1} parent=11 // pred_fallthru
          _
        // Predicated region
        $region17: #{wordpiece_transformers_forward.1} parent=11 // pred_check
          %p217 = pneg %p110
        $region18: #{wordpiece_transformers_forward.1} parent=11 // pred_check_branch
          %219 = sbr.rel (%p217) target = $region20
        $region19: #{wordpiece_transformers_forward.1} parent=11 // pred_region
          _
        $region20: #{wordpiece_transformers_forward.1} parent=11 // pred_fallthru
          _
        // Predicated region
        $region21: #{wordpiece_transformers_forward.1} parent=11 // pred_check
          %p220 = pneg %p131
        $region22: #{wordpiece_transformers_forward.1} parent=11 // pred_check_branch
          %222 = sbr.rel (%p220) target = $region24
        $region23: #{wordpiece_transformers_forward.1} parent=11 // pred_region
          _
        $region24: #{wordpiece_transformers_forward.1} parent=11 // pred_fallthru
          _
        // Predicated region
        $region25: #{wordpiece_transformers_forward.1} parent=11 // pred_check
          %p223 = pneg %p152
        $region26: #{wordpiece_transformers_forward.1} parent=11 // pred_check_branch
          %225 = sbr.rel (%p223) target = $region28
        $region27: #{wordpiece_transformers_forward.1} parent=11 // pred_region
          _
        $region28: #{wordpiece_transformers_forward.1} parent=11 // pred_fallthru
          _
        // Predicated region
        $region29: #{wordpiece_transformers_forward.1} parent=11 // pred_check
          %p226 = pneg %p173
        $region30: #{wordpiece_transformers_forward.1} parent=11 // pred_check_branch
          %228 = sbr.rel (%p226) target = $region32
        $region31: #{wordpiece_transformers_forward.1} parent=11 // pred_region
          _
        $region32: #{wordpiece_transformers_forward.1} parent=11 // pred_fallthru
          _
      $region12: #{wordpiece_transformers_forward.1} parent=5 // pred_fallthru
        _
      %p229 = scmp.lt.s32.totalorder %s16, 2
      // Predicated region
      $region33: #{wordpiece_transformers_forward.1} parent=5 // pred_check
        %p230 = pneg %p229
      $region34: #{wordpiece_transformers_forward.1} parent=5 // pred_check_branch
        %232 = sbr.rel (%p230) target = $region36
      $region35: #{wordpiece_transformers_forward.1} parent=5 // pred_region
        // Predicated region
        $region37: #{wordpiece_transformers_forward.1} parent=35 // pred_check
          %p233 = pneg %p36
        $region38: #{wordpiece_transformers_forward.1} parent=35 // pred_check_branch
          %235 = sbr.rel (%p233) target = $region40
        $region39: #{wordpiece_transformers_forward.1} parent=35 // pred_region
          %p236 = scmp.lt.s32.totalorder %s16, 1
          %s237 = scalar_select %p236, %s16, 1
          %s238 = smul.addr %s237, 8
          %s239 = scalar_lea.vmem %s0, %s238
        $region40: #{wordpiece_transformers_forward.1} parent=35 // pred_fallthru
          _
        // Predicated region
        $region41: #{wordpiece_transformers_forward.1} parent=35 // pred_check
          %p240 = pneg %p62
        $region42: #{wordpiece_transformers_forward.1} parent=35 // pred_check_branch
          %242 = sbr.rel (%p240) target = $region44
        $region43: #{wordpiece_transformers_forward.1} parent=35 // pred_region
          %p243 = scmp.lt.s32.totalorder %s16, 1
          %s244 = scalar_select %p243, %s16, 1
          %s245 = smul.addr %s244, 2
          %s246 = scalar_lea.vmem %s1, %s245
        $region44: #{wordpiece_transformers_forward.1} parent=35 // pred_fallthru
          _
      $region36: #{wordpiece_transformers_forward.1} parent=5 // pred_fallthru
        _
      %p247 = scmp.le.s32.totalorder 1, %s16
      %p248 = scmp.lt.s32.totalorder %s16, 3
      %p249 = pnand %p247, %p248
      %p250 = pneg %p249
      // Predicated region
      $region45: #{wordpiece_transformers_forward.1} parent=5 // pred_check
        _
      $region46: #{wordpiece_transformers_forward.1} parent=5 // pred_check_branch
        %252 = sbr.rel (%p249) target = $region48
      $region47: #{wordpiece_transformers_forward.1} parent=5 // pred_region
        %s253 = ssub.s32 %s16, 1
        %p254 = scmp.lt.s32.totalorder %s21, 1
        %s255 = scalar_select %p254, %s21, 1
        %s256 = smul.addr %s255, 8
        %s257 = scalar_lea.vmem %s0, %s256
        %p258 = pneg %p42
        %p259 = pneg %p39
        %p260 = scmp.lt.s32.totalorder %s21, 1
        %s261 = scalar_select %p260, %s21, 1
        %s262 = smul.addr %s261, 2
        %s263 = scalar_lea.vmem %s1, %s262
        %p264 = pneg %p68
        %p265 = pneg %p65
        %p266 = pneg %p89
        %p267 = pneg %p86
        %p268 = pneg %p110
        %p269 = pneg %p107
        %p270 = pneg %p131
        %p271 = pneg %p128
        %p272 = pneg %p152
        %p273 = pneg %p149
        %p274 = pneg %p173
        %p275 = pneg %p170
        %p276 = pneg %p199
        %p277 = pneg %p196
        %s278 = sand.u32 %s186, 1
        %s279 = scalar_lea.sflag [#allocation3], %s278
        %s280 = sand.u32 %s186, 1
        %s281 = smul.addr %s280, 8
        %s282 = scalar_lea.vmem [#allocation2], %s281
        %p283 = scmp.lt.s32.totalorder %s21, 1
        %s284 = scalar_select %p283, %s21, 1
        %s285 = smul.addr %s284, 8
        %s286 = scalar_lea.vmem %s0, %s285
        %p287 = scmp.lt.s32.totalorder %s21, 1
        %s288 = scalar_select %p287, %s21, 1
        %s289 = smul.addr %s288, 2
        %s290 = scalar_lea.vmem %s1, %s289
        %v292 = vld [vmem:[%s290] sm:$0x3]
        %v293 = vlaneseq
        %v294 = vshrl.u32 %v293, 7
        %v295 = vcvt.s32.f32 %v294
        %v296 = vlaneseq
        %v297 = vshrl.u32 %v296, 7
        %v298 = vsub.s32 1, %v297
        %v299 = vrot.slane %v292, %v298
        %vm300 = vcmp.ge.f32.partialorder %v295, %v299
        %v301 = vadd.f32 %v292, 8.0
        %v302 = vlaneseq
        %v303 = vshrl.u32 %v302, 7
        %v304 = vsub.s32 1, %v303
        %v305 = vrot.slane %v301, %v304
        %vm306 = vcmp.lt.f32.partialorder %v295, %v305
        %vm307 = vmand %vm300, %vm306
        %v308 = vlaneseq
        %v309 = vshrl.u32 %v308, 7
        %v310 = vsub.s32 0, %v309
        %v311 = vrot.slane %v292, %v310
        %v312 = vsel %vm307, %v311, -1e+30
        %v313 = vld [vmem:[%s286] sm:$0xff]
        %v314 = vld [vmem:[%s2] sm:$0x1]
        %v315 = vld [vmem:[%s2 + $0x1] sm:$0x1]
        %vm316 = vcmask 261120
        %v317 = vsel %vm316, %v313, 0.0
        %318 = vadd.xlane.f32.xlu0 %v317
        %v319 = vpop.xlane.xlu0 %318
        %v320 = vrcp.pop 32.0
        %v321 = vmul.f32 %v319, %v320
        %v322 = vsub.f32 %v313, %v321
        %v323 = vmul.f32 %v322, %v322
        %v324 = vsel %vm316, %v323, 0.0
        %325 = vadd.xlane.f32.xlu0 %v324
        %v326 = vpop.xlane.xlu0 %325
        %v327 = vmul.f32 %v326, %v320
        %v328 = vadd.f32 %v327, 1e-12
        %v329 = vrsqrt.pop %v328
        %v330 = vmul.f32 %v322, %v329
        %v331 = vlaneseq
        %v332 = vshrl.u32 %v331, 7
        %v333 = vsub.s32 0, %v332
        %v334 = vrot.slane %v314, %v333
        %v335 = vmul.f32 %v330, %v334
        %v336 = vlaneseq
        %v337 = vshrl.u32 %v336, 7
        %v338 = vsub.s32 0, %v337
        %v339 = vrot.slane %v315, %v338
        %v340 = vadd.f32 %v335, %v339
        %v341 = vld [vmem:[%s2 + $0x2] sm:$0x1]
        %v342 = vld [vmem:[%s2 + $0x3] sm:$0x1]
        %v343 = vld [vmem:[%s2 + $0x4] sm:$0x1]
        %v344 = vld [vmem:[%s2 + $0x5] sm:$0x1]
        %v345 = vld [vmem:[%s2 + $0x6] sm:$0x1]
        %v346 = vld [vmem:[%s2 + $0x7] sm:$0x1]
        %v347 = vld [vmem:[%s2 + $0x8] sm:$0x1]
        %v348 = vld [vmem:[%s2 + $0x9] sm:$0x1]
        %v349 = vpack.c.bf16 %v340, %v340
        %v350 = vld [vmem:[%s3] sm:$0xf]
        %v351 = vld [vmem:[%s3 + $0x4] sm:$0xf]
        %v352 = vld [vmem:[%s3 + $0x8] sm:$0xf]
        %v353 = vld [vmem:[%s3 + $0xc] sm:$0xf]
        %v354 = vlaneseq
        %v355 = vshrl.u32 %v354, 7
        %v356 = vsub.s32 0, %v355
        %v357 = vrot.slane %v341, %v356
        %v362 = vunpack.c.l.b16 %v350
        %v363 = vunpack.c.l.b16 %v351
        %v364 = vunpack.c.l.b16 %v352
        %v365 = vunpack.c.l.b16 %v353
        %v366 = vpack.c.b16 %v363, %v362
        %v367 = vpack.c.b16 %v365, %v364
        %v371 = vsel %vm316, %v349, 0
        %373 = vmatprep.subr.bf16.mxu0 0
        %374 = vmatpush1.bf16.msra.mxu0 0
        %375 = vmatprep.subr.bf16.mxu0 0
        %376 = vmatpush1.bf16.msra.mxu0 0
        %377 = vmatprep.subr.bf16.mxu0 0
        %378 = vmatpush1.bf16.msra.mxu0 0
        %379 = vmatprep.subr.bf16.mxu0 0
        %380 = vmatpush1.bf16.msra.mxu0 0
        %381 = vmatprep.subr.bf16.mxu0 0
        %382 = vmatpush1.bf16.msra.mxu0 0
        %383 = vmatprep.subr.bf16.mxu0 0
        %384 = vmatpush1.bf16.msra.mxu0 0
        %385 = vmatprep.subr.bf16.mxu0 0
        %386 = vmatpush1.bf16.msra.mxu0 %v367
        %387 = vmatprep.subr.bf16.mxu0 0
        %388 = vmatpush1.bf16.msra.mxu0 %v366
        %389 = vmatprep.subr.bf16.mxu0 0
        %390 = vmatpush2.bf16.msra.mxu0 0
        %391 = vmatprep.subr.bf16.mxu0 0
        %392 = vmatpush2.bf16.msra.mxu0 0
        %393 = vmatprep.subr.bf16.mxu0 0
        %394 = vmatpush2.bf16.msra.mxu0 0
        %395 = vmatprep.subr.bf16.mxu0 0
        %396 = vmatpush2.bf16.msra.mxu0 0
        %397 = vmatprep.subr.bf16.mxu0 0
        %398 = vmatpush2.bf16.msra.mxu0 0
        %399 = vmatprep.subr.bf16.mxu0 0
        %400 = vmatpush2.bf16.msra.mxu0 0
        %401 = vmatprep.subr.bf16.mxu0 0
        %402 = vmatpush2.bf16.msra.mxu0 0
        %403 = vmatprep.subr.bf16.mxu0 0
        %404 = vmatpush2.bf16.msra.mxu0 0
        %405 = vmatprep.mubr.bf16.mxu0 0
        %406 = vmatmul.mubr.bf16.gmra.mxu0 %v371
        %v407 = vpop.f32.mrf.mxu0
        %v408 = vadd.f32 %v357, %v407
        %v409 = vpop.f32.mrf.mxu0
        %v410 = vpop.f32.mrf.mxu0
        %v411 = vpop.f32.mrf.mxu0
        %412 = vdwg.mxu0
        %v413 = vpack.c.bf16 %v408, %v408
        %415 = vrot.lane.b32.xlu0 %v413, 96
        %v416 = vpop.permute.xlu0 %415
        %vm417 = vcmask 130048
        %v419 = vsel %vm417, %v413, 0
        %v422 = vsel %vm417, %v416, 0
        %424 = vmatprep.subr.bf16.mxu0 0
        %425 = vmatpush1.bf16.xpose.msra.mxu0 0
        %426 = vmatprep.subr.bf16.mxu0 0
        %427 = vmatpush1.bf16.xpose.msra.mxu0 0
        %428 = vmatprep.subr.bf16.mxu0 0
        %429 = vmatpush1.bf16.xpose.msra.mxu0 0
        %430 = vmatprep.subr.bf16.mxu0 0
        %431 = vmatpush1.bf16.xpose.msra.mxu0 0
        %432 = vmatprep.subr.bf16.mxu0 0
        %433 = vmatpush1.bf16.xpose.msra.mxu0 0
        %434 = vmatprep.subr.bf16.mxu0 0
        %435 = vmatpush1.bf16.xpose.msra.mxu0 0
        %436 = vmatprep.subr.bf16.mxu0 0
        %437 = vmatpush1.bf16.xpose.msra.mxu0 0
        %438 = vmatprep.subr.bf16.mxu0 0
        %439 = vmatpush1.bf16.xpose.msra.mxu0 %v422
        %440 = vmatprep.subr.bf16.mxu0 0
        %441 = vmatpush2.bf16.xpose.msra.mxu0 0
        %442 = vmatprep.subr.bf16.mxu0 0
        %443 = vmatpush2.bf16.xpose.msra.mxu0 0
        %444 = vmatprep.subr.bf16.mxu0 0
        %445 = vmatpush2.bf16.xpose.msra.mxu0 0
        %446 = vmatprep.subr.bf16.mxu0 0
        %447 = vmatpush2.bf16.xpose.msra.mxu0 0
        %448 = vmatprep.subr.bf16.mxu0 0
        %449 = vmatpush2.bf16.xpose.msra.mxu0 0
        %450 = vmatprep.subr.bf16.mxu0 0
        %451 = vmatpush2.bf16.xpose.msra.mxu0 0
        %452 = vmatprep.subr.bf16.mxu0 0
        %453 = vmatpush2.bf16.xpose.msra.mxu0 0
        %454 = vmatprep.subr.bf16.mxu0 0
        %455 = vmatpush2.bf16.xpose.msra.mxu0 0
        %456 = vmatprep.mubr.bf16.mxu0 0
        %457 = vmatmul.mubr.bf16.gmra.mxu0 %v419
        %v458 = vpop.f32.mrf.mxu0
        %v459 = vadd.f32 %v312, %v458
        %v460 = vpop.f32.mrf.mxu0
        %v461 = vpop.f32.mrf.mxu0
        %v462 = vpop.f32.mrf.mxu0
        %463 = vdwg.mxu0
        %vm464 = vcmask 64512
        %v465 = vsel %vm464, %v459, -inf
        %466 = vmax.xlane.f32.xlu0 %v465
        %v467 = vpop.xlane.xlu0 %466
        %v468 = vsub.f32 %v459, %v467
        %v469 = vmul.f32 %v468, 1.442695
        %v470 = vpow.pop %v469
        %v471 = vsel %vm464, %v470, 0.0
        %472 = vadd.xlane.f32.xlu0 %v471
        %v473 = vpop.xlane.xlu0 %472
        %v474 = vpack.c.bf16 %v470, %v470
        %475 = vrot.lane.b32.xlu0 %v413, 64
        %v476 = vpop.permute.xlu0 %475
        %v478 = vsel %vm464, %v474, 0
        %vm480 = vcmask 1043456
        %v482 = vsel %vm480, %v476, 0
        %484 = vmatprep.subr.bf16.mxu0 0
        %485 = vmatpush1.bf16.msra.mxu0 0
        %486 = vmatprep.subr.bf16.mxu0 0
        %487 = vmatpush1.bf16.msra.mxu0 0
        %488 = vmatprep.subr.bf16.mxu0 0
        %489 = vmatpush1.bf16.msra.mxu0 0
        %490 = vmatprep.subr.bf16.mxu0 0
        %491 = vmatpush1.bf16.msra.mxu0 0
        %492 = vmatprep.subr.bf16.mxu0 0
        %493 = vmatpush1.bf16.msra.mxu0 0
        %494 = vmatprep.subr.bf16.mxu0 0
        %495 = vmatpush1.bf16.msra.mxu0 0
        %496 = vmatprep.subr.bf16.mxu0 0
        %497 = vmatpush1.bf16.msra.mxu0 0
        %498 = vmatprep.subr.bf16.mxu0 0
        %499 = vmatpush1.bf16.msra.mxu0 %v482
        %500 = vmatprep.subr.bf16.mxu0 0
        %501 = vmatpush2.bf16.msra.mxu0 0
        %502 = vmatprep.subr.bf16.mxu0 0
        %503 = vmatpush2.bf16.msra.mxu0 0
        %504 = vmatprep.subr.bf16.mxu0 0
        %505 = vmatpush2.bf16.msra.mxu0 0
        %506 = vmatprep.subr.bf16.mxu0 0
        %507 = vmatpush2.bf16.msra.mxu0 0
        %508 = vmatprep.subr.bf16.mxu0 0
        %509 = vmatpush2.bf16.msra.mxu0 0
        %510 = vmatprep.subr.bf16.mxu0 0
        %511 = vmatpush2.bf16.msra.mxu0 0
        %512 = vmatprep.subr.bf16.mxu0 0
        %513 = vmatpush2.bf16.msra.mxu0 0
        %514 = vmatprep.subr.bf16.mxu0 0
        %515 = vmatpush2.bf16.msra.mxu0 0
        %516 = vmatprep.mubr.bf16.mxu0 0
        %517 = vmatmul.mubr.bf16.gmra.mxu0 %v478
        %v518 = vpop.f32.mrf.mxu0
        %v519 = vadd.f32 0.0, %v518
        %v520 = vpop.f32.mrf.mxu0
        %v521 = vpop.f32.mrf.mxu0
        %v522 = vpop.f32.mrf.mxu0
        %523 = vdwg.mxu0
        %v524 = vrcp.pop %v473
        %v525 = vmul.f32 %v519, %v524
        %526 = vrot.lane.b32.xlu0 %v413, 112
        %v527 = vpop.permute.xlu0 %526
        %528 = vrot.lane.b32.xlu0 %v413, 80
        %v529 = vpop.permute.xlu0 %528
        %v531 = vsel %vm417, %v527, 0
        %v534 = vsel %vm417, %v529, 0
        %536 = vmatprep.subr.bf16.mxu0 0
        %537 = vmatpush1.bf16.xpose.msra.mxu0 0
        %538 = vmatprep.subr.bf16.mxu0 0
        %539 = vmatpush1.bf16.xpose.msra.mxu0 0
        %540 = vmatprep.subr.bf16.mxu0 0
        %541 = vmatpush1.bf16.xpose.msra.mxu0 0
        %542 = vmatprep.subr.bf16.mxu0 0
        %543 = vmatpush1.bf16.xpose.msra.mxu0 0
        %544 = vmatprep.subr.bf16.mxu0 0
        %545 = vmatpush1.bf16.xpose.msra.mxu0 0
        %546 = vmatprep.subr.bf16.mxu0 0
        %547 = vmatpush1.bf16.xpose.msra.mxu0 0
        %548 = vmatprep.subr.bf16.mxu0 0
        %549 = vmatpush1.bf16.xpose.msra.mxu0 0
        %550 = vmatprep.subr.bf16.mxu0 0
        %551 = vmatpush1.bf16.xpose.msra.mxu0 %v534
        %552 = vmatprep.subr.bf16.mxu0 0
        %553 = vmatpush2.bf16.xpose.msra.mxu0 0
        %554 = vmatprep.subr.bf16.mxu0 0
        %555 = vmatpush2.bf16.xpose.msra.mxu0 0
        %556 = vmatprep.subr.bf16.mxu0 0
        %557 = vmatpush2.bf16.xpose.msra.mxu0 0
        %558 = vmatprep.subr.bf16.mxu0 0
        %559 = vmatpush2.bf16.xpose.msra.mxu0 0
        %560 = vmatprep.subr.bf16.mxu0 0
        %561 = vmatpush2.bf16.xpose.msra.mxu0 0
        %562 = vmatprep.subr.bf16.mxu0 0
        %563 = vmatpush2.bf16.xpose.msra.mxu0 0
        %564 = vmatprep.subr.bf16.mxu0 0
        %565 = vmatpush2.bf16.xpose.msra.mxu0 0
        %566 = vmatprep.subr.bf16.mxu0 0
        %567 = vmatpush2.bf16.xpose.msra.mxu0 0
        %568 = vmatprep.mubr.bf16.mxu0 0
        %569 = vmatmul.mubr.bf16.gmra.mxu0 %v531
        %v570 = vpop.f32.mrf.mxu0
        %v571 = vadd.f32 %v312, %v570
        %v572 = vpop.f32.mrf.mxu0
        %v573 = vpop.f32.mrf.mxu0
        %v574 = vpop.f32.mrf.mxu0
        %575 = vdwg.mxu0
        %v576 = vsel %vm464, %v571, -inf
        %577 = vmax.xlane.f32.xlu0 %v576
        %v578 = vpop.xlane.xlu0 %577
        %v579 = vsub.f32 %v571, %v578
        %v580 = vmul.f32 %v579, 1.442695
        %v581 = vpow.pop %v580
        %v582 = vsel %vm464, %v581, 0.0
        %583 = vadd.xlane.f32.xlu0 %v582
        %v584 = vpop.xlane.xlu0 %583
        %v585 = vpack.c.bf16 %v581, %v581
        %586 = vrot.lane.b32.xlu0 %v413, 48
        %v587 = vpop.permute.xlu0 %586
        %v589 = vsel %vm464, %v585, 0
        %v592 = vsel %vm480, %v587, 0
        %594 = vmatprep.subr.bf16.mxu0 0
        %595 = vmatpush1.bf16.msra.mxu0 0
        %596 = vmatprep.subr.bf16.mxu0 0
        %597 = vmatpush1.bf16.msra.mxu0 0
        %598 = vmatprep.subr.bf16.mxu0 0
        %599 = vmatpush1.bf16.msra.mxu0 0
        %600 = vmatprep.subr.bf16.mxu0 0
        %601 = vmatpush1.bf16.msra.mxu0 0
        %602 = vmatprep.subr.bf16.mxu0 0
        %603 = vmatpush1.bf16.msra.mxu0 0
        %604 = vmatprep.subr.bf16.mxu0 0
        %605 = vmatpush1.bf16.msra.mxu0 0
        %606 = vmatprep.subr.bf16.mxu0 0
        %607 = vmatpush1.bf16.msra.mxu0 0
        %608 = vmatprep.subr.bf16.mxu0 0
        %609 = vmatpush1.bf16.msra.mxu0 %v592
        %610 = vmatprep.subr.bf16.mxu0 0
        %611 = vmatpush2.bf16.msra.mxu0 0
        %612 = vmatprep.subr.bf16.mxu0 0
        %613 = vmatpush2.bf16.msra.mxu0 0
        %614 = vmatprep.subr.bf16.mxu0 0
        %615 = vmatpush2.bf16.msra.mxu0 0
        %616 = vmatprep.subr.bf16.mxu0 0
        %617 = vmatpush2.bf16.msra.mxu0 0
        %618 = vmatprep.subr.bf16.mxu0 0
        %619 = vmatpush2.bf16.msra.mxu0 0
        %620 = vmatprep.subr.bf16.mxu0 0
        %621 = vmatpush2.bf16.msra.mxu0 0
        %622 = vmatprep.subr.bf16.mxu0 0
        %623 = vmatpush2.bf16.msra.mxu0 0
        %624 = vmatprep.subr.bf16.mxu0 0
        %625 = vmatpush2.bf16.msra.mxu0 0
        %626 = vmatprep.mubr.bf16.mxu0 0
        %627 = vmatmul.mubr.bf16.gmra.mxu0 %v589
        %v628 = vpop.f32.mrf.mxu0
        %v629 = vadd.f32 0.0, %v628
        %v630 = vpop.f32.mrf.mxu0
        %v631 = vpop.f32.mrf.mxu0
        %v632 = vpop.f32.mrf.mxu0
        %633 = vdwg.mxu0
        %v634 = vrcp.pop %v584
        %v635 = vmul.f32 %v629, %v634
        %637 = vrot.lane.b32.xlu0 %v635, 16
        %v638 = vpop.permute.xlu0 %637
        %v640 = vsel %vm417, %v525, %v638
        %v641 = vpack.c.bf16 %v640, %v640
        %v642 = vld [vmem:[%s4] sm:$0xf]
        %v643 = vld [vmem:[%s4 + $0x4] sm:$0xf]
        %v644 = vld [vmem:[%s4 + $0x8] sm:$0xf]
        %v645 = vld [vmem:[%s4 + $0xc] sm:$0xf]
        %v646 = vlaneseq
        %v647 = vshrl.u32 %v646, 7
        %v648 = vsub.s32 0, %v647
        %v649 = vrot.slane %v342, %v648
        %v654 = vunpack.c.l.b16 %v642
        %v655 = vunpack.c.l.b16 %v643
        %v656 = vunpack.c.l.b16 %v644
        %v657 = vunpack.c.l.b16 %v645
        %v658 = vpack.c.b16 %v655, %v654
        %v659 = vpack.c.b16 %v657, %v656
        %v663 = vsel %vm316, %v641, 0
        %665 = vmatprep.subr.bf16.mxu0 0
        %666 = vmatpush1.bf16.msra.mxu0 0
        %667 = vmatprep.subr.bf16.mxu0 0
        %668 = vmatpush1.bf16.msra.mxu0 0
        %669 = vmatprep.subr.bf16.mxu0 0
        %670 = vmatpush1.bf16.msra.mxu0 0
        %671 = vmatprep.subr.bf16.mxu0 0
        %672 = vmatpush1.bf16.msra.mxu0 0
        %673 = vmatprep.subr.bf16.mxu0 0
        %674 = vmatpush1.bf16.msra.mxu0 0
        %675 = vmatprep.subr.bf16.mxu0 0
        %676 = vmatpush1.bf16.msra.mxu0 0
        %677 = vmatprep.subr.bf16.mxu0 0
        %678 = vmatpush1.bf16.msra.mxu0 %v659
        %679 = vmatprep.subr.bf16.mxu0 0
        %680 = vmatpush1.bf16.msra.mxu0 %v658
        %681 = vmatprep.subr.bf16.mxu0 0
        %682 = vmatpush2.bf16.msra.mxu0 0
        %683 = vmatprep.subr.bf16.mxu0 0
        %684 = vmatpush2.bf16.msra.mxu0 0
        %685 = vmatprep.subr.bf16.mxu0 0
        %686 = vmatpush2.bf16.msra.mxu0 0
        %687 = vmatprep.subr.bf16.mxu0 0
        %688 = vmatpush2.bf16.msra.mxu0 0
        %689 = vmatprep.subr.bf16.mxu0 0
        %690 = vmatpush2.bf16.msra.mxu0 0
        %691 = vmatprep.subr.bf16.mxu0 0
        %692 = vmatpush2.bf16.msra.mxu0 0
        %693 = vmatprep.subr.bf16.mxu0 0
        %694 = vmatpush2.bf16.msra.mxu0 0
        %695 = vmatprep.subr.bf16.mxu0 0
        %696 = vmatpush2.bf16.msra.mxu0 0
        %697 = vmatprep.mubr.bf16.mxu0 0
        %698 = vmatmul.mubr.bf16.gmra.mxu0 %v663
        %v699 = vpop.f32.mrf.mxu0
        %v700 = vadd.f32 %v649, %v699
        %v701 = vpop.f32.mrf.mxu0
        %v702 = vpop.f32.mrf.mxu0
        %v703 = vpop.f32.mrf.mxu0
        %704 = vdwg.mxu0
        %v705 = vadd.f32 %v340, %v700
        %v706 = vsel %vm316, %v705, 0.0
        %707 = vadd.xlane.f32.xlu0 %v706
        %v708 = vpop.xlane.xlu0 %707
        %v709 = vmul.f32 %v708, %v320
        %v710 = vsub.f32 %v705, %v709
        %v711 = vmul.f32 %v710, %v710
        %v712 = vsel %vm316, %v711, 0.0
        %713 = vadd.xlane.f32.xlu0 %v712
        %v714 = vpop.xlane.xlu0 %713
        %v715 = vmul.f32 %v714, %v320
        %v716 = vadd.f32 %v715, 1e-12
        %v717 = vrsqrt.pop %v716
        %v718 = vmul.f32 %v710, %v717
        %v719 = vlaneseq
        %v720 = vshrl.u32 %v719, 7
        %v721 = vsub.s32 0, %v720
        %v722 = vrot.slane %v343, %v721
        %v723 = vmul.f32 %v718, %v722
        %v724 = vlaneseq
        %v725 = vshrl.u32 %v724, 7
        %v726 = vsub.s32 0, %v725
        %v727 = vrot.slane %v344, %v726
        %v728 = vadd.f32 %v723, %v727
        %v729 = vpack.c.bf16 %v728, %v728
        %v730 = vld [vmem:[%s5] sm:$0xf]
        %v731 = vld [vmem:[%s5 + $0x4] sm:$0xf]
        %v732 = vld [vmem:[%s5 + $0x8] sm:$0xf]
        %v733 = vld [vmem:[%s5 + $0xc] sm:$0xf]
        %v734 = vlaneseq
        %v735 = vshrl.u32 %v734, 7
        %v736 = vsub.s32 0, %v735
        %v737 = vrot.slane %v345, %v736
        %v742 = vunpack.c.l.b16 %v730
        %v743 = vunpack.c.l.b16 %v731
        %v744 = vunpack.c.l.b16 %v732
        %v745 = vunpack.c.l.b16 %v733
        %v746 = vpack.c.b16 %v743, %v742
        %v747 = vpack.c.b16 %v745, %v744
        %v751 = vsel %vm316, %v729, 0
        %753 = vmatprep.subr.bf16.mxu0 0
        %754 = vmatpush1.bf16.msra.mxu0 0
        %755 = vmatprep.subr.bf16.mxu0 0
        %756 = vmatpush1.bf16.msra.mxu0 0
        %757 = vmatprep.subr.bf16.mxu0 0
        %758 = vmatpush1.bf16.msra.mxu0 0
        %759 = vmatprep.subr.bf16.mxu0 0
        %760 = vmatpush1.bf16.msra.mxu0 0
        %761 = vmatprep.subr.bf16.mxu0 0
        %762 = vmatpush1.bf16.msra.mxu0 0
        %763 = vmatprep.subr.bf16.mxu0 0
        %764 = vmatpush1.bf16.msra.mxu0 0
        %765 = vmatprep.subr.bf16.mxu0 0
        %766 = vmatpush1.bf16.msra.mxu0 %v747
        %767 = vmatprep.subr.bf16.mxu0 0
        %768 = vmatpush1.bf16.msra.mxu0 %v746
        %769 = vmatprep.subr.bf16.mxu0 0
        %770 = vmatpush2.bf16.msra.mxu0 0
        %771 = vmatprep.subr.bf16.mxu0 0
        %772 = vmatpush2.bf16.msra.mxu0 0
        %773 = vmatprep.subr.bf16.mxu0 0
        %774 = vmatpush2.bf16.msra.mxu0 0
        %775 = vmatprep.subr.bf16.mxu0 0
        %776 = vmatpush2.bf16.msra.mxu0 0
        %777 = vmatprep.subr.bf16.mxu0 0
        %778 = vmatpush2.bf16.msra.mxu0 0
        %779 = vmatprep.subr.bf16.mxu0 0
        %780 = vmatpush2.bf16.msra.mxu0 0
        %781 = vmatprep.subr.bf16.mxu0 0
        %782 = vmatpush2.bf16.msra.mxu0 0
        %783 = vmatprep.subr.bf16.mxu0 0
        %784 = vmatpush2.bf16.msra.mxu0 0
        %785 = vmatprep.mubr.bf16.mxu0 0
        %786 = vmatmul.mubr.bf16.gmra.mxu0 %v751
        %v787 = vpop.f32.mrf.mxu0
        %v788 = vadd.f32 %v737, %v787
        %v789 = vpop.f32.mrf.mxu0
        %v790 = vpop.f32.mrf.mxu0
        %v791 = vpop.f32.mrf.mxu0
        %792 = vdwg.mxu0
        %v793 = vmul.f32 %v788, 0.5
        %v794 = vmul.f32 %v788, 0.044715
        %v795 = vmul.f32 %v794, %v788
        %v796 = vmul.f32 %v795, %v788
        %v797 = vadd.f32 %v788, %v796
        %v798 = vmul.f32 %v797, 0.7978846
        %v799 = vtanh.pop %v798
        %v800 = vadd.f32 %v799, 1.0
        %v801 = vmul.f32 %v793, %v800
        %v802 = vpack.c.bf16 %v801, %v801
        %v803 = vld [vmem:[%s6] sm:$0xf]
        %v804 = vld [vmem:[%s6 + $0x4] sm:$0xf]
        %v805 = vld [vmem:[%s6 + $0x8] sm:$0xf]
        %v806 = vld [vmem:[%s6 + $0xc] sm:$0xf]
        %v807 = vld [vmem:[%s6 + $0x10] sm:$0xf]
        %v808 = vld [vmem:[%s6 + $0x14] sm:$0xf]
        %v809 = vld [vmem:[%s6 + $0x18] sm:$0xf]
        %v810 = vld [vmem:[%s6 + $0x1c] sm:$0xf]
        %v811 = vlaneseq
        %v812 = vshrl.u32 %v811, 7
        %v813 = vsub.s32 0, %v812
        %v814 = vrot.slane %v346, %v813
        %v823 = vunpack.c.l.b16 %v803
        %v824 = vunpack.c.l.b16 %v804
        %v825 = vunpack.c.l.b16 %v805
        %v826 = vunpack.c.l.b16 %v806
        %v827 = vunpack.c.l.b16 %v807
        %v828 = vunpack.c.l.b16 %v808
        %v829 = vunpack.c.l.b16 %v809
        %v830 = vunpack.c.l.b16 %v810
        %v831 = vpack.c.b16 %v824, %v823
        %v832 = vpack.c.b16 %v826, %v825
        %v833 = vpack.c.b16 %v828, %v827
        %v834 = vpack.c.b16 %v830, %v829
        %vm839 = vcmask 523264
        %v841 = vsel %vm839, %v802, 0
        %843 = vmatprep.subr.bf16.mxu0 0
        %844 = vmatpush1.bf16.msra.mxu0 0
        %845 = vmatprep.subr.bf16.mxu0 0
        %846 = vmatpush1.bf16.msra.mxu0 0
        %847 = vmatprep.subr.bf16.mxu0 0
        %848 = vmatpush1.bf16.msra.mxu0 0
        %849 = vmatprep.subr.bf16.mxu0 0
        %850 = vmatpush1.bf16.msra.mxu0 0
        %851 = vmatprep.subr.bf16.mxu0 0
        %852 = vmatpush1.bf16.msra.mxu0 %v834
        %853 = vmatprep.subr.bf16.mxu0 0
        %854 = vmatpush1.bf16.msra.mxu0 %v833
        %855 = vmatprep.subr.bf16.mxu0 0
        %856 = vmatpush1.bf16.msra.mxu0 %v832
        %857 = vmatprep.subr.bf16.mxu0 0
        %858 = vmatpush1.bf16.msra.mxu0 %v831
        %859 = vmatprep.subr.bf16.mxu0 0
        %860 = vmatpush2.bf16.msra.mxu0 0
        %861 = vmatprep.subr.bf16.mxu0 0
        %862 = vmatpush2.bf16.msra.mxu0 0
        %863 = vmatprep.subr.bf16.mxu0 0
        %864 = vmatpush2.bf16.msra.mxu0 0
        %865 = vmatprep.subr.bf16.mxu0 0
        %866 = vmatpush2.bf16.msra.mxu0 0
        %867 = vmatprep.subr.bf16.mxu0 0
        %868 = vmatpush2.bf16.msra.mxu0 0
        %869 = vmatprep.subr.bf16.mxu0 0
        %870 = vmatpush2.bf16.msra.mxu0 0
        %871 = vmatprep.subr.bf16.mxu0 0
        %872 = vmatpush2.bf16.msra.mxu0 0
        %873 = vmatprep.subr.bf16.mxu0 0
        %874 = vmatpush2.bf16.msra.mxu0 0
        %875 = vmatprep.mubr.bf16.mxu0 0
        %876 = vmatmul.mubr.bf16.gmra.mxu0 %v841
        %v877 = vpop.f32.mrf.mxu0
        %v878 = vadd.f32 %v814, %v877
        %v879 = vpop.f32.mrf.mxu0
        %v880 = vpop.f32.mrf.mxu0
        %v881 = vpop.f32.mrf.mxu0
        %882 = vdwg.mxu0
        %v883 = vadd.f32 %v728, %v878
        %v884 = vsel %vm316, %v883, 0.0
        %885 = vadd.xlane.f32.xlu0 %v884
        %v886 = vpop.xlane.xlu0 %885
        %v887 = vmul.f32 %v886, %v320
        %v888 = vsub.f32 %v883, %v887
        %v889 = vmul.f32 %v888, %v888
        %v890 = vsel %vm316, %v889, 0.0
        %891 = vadd.xlane.f32.xlu0 %v890
        %v892 = vpop.xlane.xlu0 %891
        %v893 = vmul.f32 %v892, %v320
        %v894 = vadd.f32 %v893, 1e-12
        %v895 = vrsqrt.pop %v894
        %v896 = vmul.f32 %v888, %v895
        %v897 = vlaneseq
        %v898 = vshrl.u32 %v897, 7
        %v899 = vsub.s32 0, %v898
        %v900 = vrot.slane %v347, %v899
        %v901 = vmul.f32 %v896, %v900
        %v902 = vlaneseq
        %v903 = vshrl.u32 %v902, 7
        %v904 = vsub.s32 0, %v903
        %v905 = vrot.slane %v348, %v904
        %v906 = vadd.f32 %v901, %v905
        %v907 = vld [vmem:[%s2 + $0xa] sm:$0x1]
        %v908 = vld [vmem:[%s2 + $0xb] sm:$0x1]
        %v909 = vld [vmem:[%s2 + $0xc] sm:$0x1]
        %v910 = vld [vmem:[%s2 + $0xd] sm:$0x1]
        %v911 = vld [vmem:[%s2 + $0xe] sm:$0x1]
        %v912 = vld [vmem:[%s2 + $0xf] sm:$0x1]
        %v913 = vld [vmem:[%s2 + $0x10] sm:$0x1]
        %v914 = vld [vmem:[%s2 + $0x11] sm:$0x1]
        %v915 = vpack.c.bf16 %v906, %v906
        %s916 = scalar_lea.vmem %s3, 16
        %v917 = vld [vmem:[%s916] sm:$0xf]
        %v918 = vld [vmem:[%s916 + $0x4] sm:$0xf]
        %v919 = vld [vmem:[%s916 + $0x8] sm:$0xf]
        %v920 = vld [vmem:[%s916 + $0xc] sm:$0xf]
        %v921 = vlaneseq
        %v922 = vshrl.u32 %v921, 7
        %v923 = vsub.s32 0, %v922
        %v924 = vrot.slane %v907, %v923
        %v929 = vunpack.c.l.b16 %v917
        %v930 = vunpack.c.l.b16 %v918
        %v931 = vunpack.c.l.b16 %v919
        %v932 = vunpack.c.l.b16 %v920
        %v933 = vpack.c.b16 %v930, %v929
        %v934 = vpack.c.b16 %v932, %v931
        %v938 = vsel %vm316, %v915, 0
        %940 = vmatprep.subr.bf16.mxu0 0
        %941 = vmatpush1.bf16.msra.mxu0 0
        %942 = vmatprep.subr.bf16.mxu0 0
        %943 = vmatpush1.bf16.msra.mxu0 0
        %944 = vmatprep.subr.bf16.mxu0 0
        %945 = vmatpush1.bf16.msra.mxu0 0
        %946 = vmatprep.subr.bf16.mxu0 0
        %947 = vmatpush1.bf16.msra.mxu0 0
        %948 = vmatprep.subr.bf16.mxu0 0
        %949 = vmatpush1.bf16.msra.mxu0 0
        %950 = vmatprep.subr.bf16.mxu0 0
        %951 = vmatpush1.bf16.msra.mxu0 0
        %952 = vmatprep.subr.bf16.mxu0 0
        %953 = vmatpush1.bf16.msra.mxu0 %v934
        %954 = vmatprep.subr.bf16.mxu0 0
        %955 = vmatpush1.bf16.msra.mxu0 %v933
        %956 = vmatprep.subr.bf16.mxu0 0
        %957 = vmatpush2.bf16.msra.mxu0 0
        %958 = vmatprep.subr.bf16.mxu0 0
        %959 = vmatpush2.bf16.msra.mxu0 0
        %960 = vmatprep.subr.bf16.mxu0 0
        %961 = vmatpush2.bf16.msra.mxu0 0
        %962 = vmatprep.subr.bf16.mxu0 0
        %963 = vmatpush2.bf16.msra.mxu0 0
        %964 = vmatprep.subr.bf16.mxu0 0
        %965 = vmatpush2.bf16.msra.mxu0 0
        %966 = vmatprep.subr.bf16.mxu0 0
        %967 = vmatpush2.bf16.msra.mxu0 0
        %968 = vmatprep.subr.bf16.mxu0 0
        %969 = vmatpush2.bf16.msra.mxu0 0
        %970 = vmatprep.subr.bf16.mxu0 0
        %971 = vmatpush2.bf16.msra.mxu0 0
        %972 = vmatprep.mubr.bf16.mxu0 0
        %973 = vmatmul.mubr.bf16.gmra.mxu0 %v938
        %v974 = vpop.f32.mrf.mxu0
        %v975 = vadd.f32 %v924, %v974
        %v976 = vpop.f32.mrf.mxu0
        %v977 = vpop.f32.mrf.mxu0
        %v978 = vpop.f32.mrf.mxu0
        %979 = vdwg.mxu0
        %v980 = vpack.c.bf16 %v975, %v975
        %982 = vrot.lane.b32.xlu0 %v980, 96
        %v983 = vpop.permute.xlu0 %982
        %v985 = vsel %vm417, %v980, 0
        %v988 = vsel %vm417, %v983, 0
        %990 = vmatprep.subr.bf16.mxu0 0
        %991 = vmatpush1.bf16.xpose.msra.mxu0 0
        %992 = vmatprep.subr.bf16.mxu0 0
        %993 = vmatpush1.bf16.xpose.msra.mxu0 0
        %994 = vmatprep.subr.bf16.mxu0 0
        %995 = vmatpush1.bf16.xpose.msra.mxu0 0
        %996 = vmatprep.subr.bf16.mxu0 0
        %997 = vmatpush1.bf16.xpose.msra.mxu0 0
        %998 = vmatprep.subr.bf16.mxu0 0
        %999 = vmatpush1.bf16.xpose.msra.mxu0 0
        %1000 = vmatprep.subr.bf16.mxu0 0
        %1001 = vmatpush1.bf16.xpose.msra.mxu0 0
        %1002 = vmatprep.subr.bf16.mxu0 0
        %1003 = vmatpush1.bf16.xpose.msra.mxu0 0
        %1004 = vmatprep.subr.bf16.mxu0 0
        %1005 = vmatpush1.bf16.xpose.msra.mxu0 %v988
        %1006 = vmatprep.subr.bf16.mxu0 0
        %1007 = vmatpush2.bf16.xpose.msra.mxu0 0
        %1008 = vmatprep.subr.bf16.mxu0 0
        %1009 = vmatpush2.bf16.xpose.msra.mxu0 0
        %1010 = vmatprep.subr.bf16.mxu0 0
        %1011 = vmatpush2.bf16.xpose.msra.mxu0 0
        %1012 = vmatprep.subr.bf16.mxu0 0
        %1013 = vmatpush2.bf16.xpose.msra.mxu0 0
        %1014 = vmatprep.subr.bf16.mxu0 0
        %1015 = vmatpush2.bf16.xpose.msra.mxu0 0
        %1016 = vmatprep.subr.bf16.mxu0 0
        %1017 = vmatpush2.bf16.xpose.msra.mxu0 0
        %1018 = vmatprep.subr.bf16.mxu0 0
        %1019 = vmatpush2.bf16.xpose.msra.mxu0 0
        %1020 = vmatprep.subr.bf16.mxu0 0
        %1021 = vmatpush2.bf16.xpose.msra.mxu0 0
        %1022 = vmatprep.mubr.bf16.mxu0 0
        %1023 = vmatmul.mubr.bf16.gmra.mxu0 %v985
        %v1024 = vpop.f32.mrf.mxu0
        %v1025 = vadd.f32 %v312, %v1024
        %v1026 = vpop.f32.mrf.mxu0
        %v1027 = vpop.f32.mrf.mxu0
        %v1028 = vpop.f32.mrf.mxu0
        %1029 = vdwg.mxu0
        %v1030 = vsel %vm464, %v1025, -inf
        %1031 = vmax.xlane.f32.xlu0 %v1030
        %v1032 = vpop.xlane.xlu0 %1031
        %v1033 = vsub.f32 %v1025, %v1032
        %v1034 = vmul.f32 %v1033, 1.442695
        %v1035 = vpow.pop %v1034
        %v1036 = vsel %vm464, %v1035, 0.0
        %1037 = vadd.xlane.f32.xlu0 %v1036
        %v1038 = vpop.xlane.xlu0 %1037
        %v1039 = vpack.c.bf16 %v1035, %v1035
        %1040 = vrot.lane.b32.xlu0 %v980, 64
        %v1041 = vpop.permute.xlu0 %1040
        %v1043 = vsel %vm464, %v1039, 0
        %v1046 = vsel %vm480, %v1041, 0
        %1048 = vmatprep.subr.bf16.mxu0 0
        %1049 = vmatpush1.bf16.msra.mxu0 0
        %1050 = vmatprep.subr.bf16.mxu0 0
        %1051 = vmatpush1.bf16.msra.mxu0 0
        %1052 = vmatprep.subr.bf16.mxu0 0
        %1053 = vmatpush1.bf16.msra.mxu0 0
        %1054 = vmatprep.subr.bf16.mxu0 0
        %1055 = vmatpush1.bf16.msra.mxu0 0
        %1056 = vmatprep.subr.bf16.mxu0 0
        %1057 = vmatpush1.bf16.msra.mxu0 0
        %1058 = vmatprep.subr.bf16.mxu0 0
        %1059 = vmatpush1.bf16.msra.mxu0 0
        %1060 = vmatprep.subr.bf16.mxu0 0
        %1061 = vmatpush1.bf16.msra.mxu0 0
        %1062 = vmatprep.subr.bf16.mxu0 0
        %1063 = vmatpush1.bf16.msra.mxu0 %v1046
        %1064 = vmatprep.subr.bf16.mxu0 0
        %1065 = vmatpush2.bf16.msra.mxu0 0
        %1066 = vmatprep.subr.bf16.mxu0 0
        %1067 = vmatpush2.bf16.msra.mxu0 0
        %1068 = vmatprep.subr.bf16.mxu0 0
        %1069 = vmatpush2.bf16.msra.mxu0 0
        %1070 = vmatprep.subr.bf16.mxu0 0
        %1071 = vmatpush2.bf16.msra.mxu0 0
        %1072 = vmatprep.subr.bf16.mxu0 0
        %1073 = vmatpush2.bf16.msra.mxu0 0
        %1074 = vmatprep.subr.bf16.mxu0 0
        %1075 = vmatpush2.bf16.msra.mxu0 0
        %1076 = vmatprep.subr.bf16.mxu0 0
        %1077 = vmatpush2.bf16.msra.mxu0 0
        %1078 = vmatprep.subr.bf16.mxu0 0
        %1079 = vmatpush2.bf16.msra.mxu0 0
        %1080 = vmatprep.mubr.bf16.mxu0 0
        %1081 = vmatmul.mubr.bf16.gmra.mxu0 %v1043
        %v1082 = vpop.f32.mrf.mxu0
        %v1083 = vadd.f32 0.0, %v1082
        %v1084 = vpop.f32.mrf.mxu0
        %v1085 = vpop.f32.mrf.mxu0
        %v1086 = vpop.f32.mrf.mxu0
        %1087 = vdwg.mxu0
        %v1088 = vrcp.pop %v1038
        %v1089 = vmul.f32 %v1083, %v1088
        %1090 = vrot.lane.b32.xlu0 %v980, 112
        %v1091 = vpop.permute.xlu0 %1090
        %1092 = vrot.lane.b32.xlu0 %v980, 80
        %v1093 = vpop.permute.xlu0 %1092
        %v1095 = vsel %vm417, %v1091, 0
        %v1098 = vsel %vm417, %v1093, 0
        %1100 = vmatprep.subr.bf16.mxu0 0
        %1101 = vmatpush1.bf16.xpose.msra.mxu0 0
        %1102 = vmatprep.subr.bf16.mxu0 0
        %1103 = vmatpush1.bf16.xpose.msra.mxu0 0
        %1104 = vmatprep.subr.bf16.mxu0 0
        %1105 = vmatpush1.bf16.xpose.msra.mxu0 0
        %1106 = vmatprep.subr.bf16.mxu0 0
        %1107 = vmatpush1.bf16.xpose.msra.mxu0 0
        %1108 = vmatprep.subr.bf16.mxu0 0
        %1109 = vmatpush1.bf16.xpose.msra.mxu0 0
        %1110 = vmatprep.subr.bf16.mxu0 0
        %1111 = vmatpush1.bf16.xpose.msra.mxu0 0
        %1112 = vmatprep.subr.bf16.mxu0 0
        %1113 = vmatpush1.bf16.xpose.msra.mxu0 0
        %1114 = vmatprep.subr.bf16.mxu0 0
        %1115 = vmatpush1.bf16.xpose.msra.mxu0 %v1098
        %1116 = vmatprep.subr.bf16.mxu0 0
        %1117 = vmatpush2.bf16.xpose.msra.mxu0 0
        %1118 = vmatprep.subr.bf16.mxu0 0
        %1119 = vmatpush2.bf16.xpose.msra.mxu0 0
        %1120 = vmatprep.subr.bf16.mxu0 0
        %1121 = vmatpush2.bf16.xpose.msra.mxu0 0
        %1122 = vmatprep.subr.bf16.mxu0 0
        %1123 = vmatpush2.bf16.xpose.msra.mxu0 0
        %1124 = vmatprep.subr.bf16.mxu0 0
        %1125 = vmatpush2.bf16.xpose.msra.mxu0 0
        %1126 = vmatprep.subr.bf16.mxu0 0
        %1127 = vmatpush2.bf16.xpose.msra.mxu0 0
        %1128 = vmatprep.subr.bf16.mxu0 0
        %1129 = vmatpush2.bf16.xpose.msra.mxu0 0
        %1130 = vmatprep.subr.bf16.mxu0 0
        %1131 = vmatpush2.bf16.xpose.msra.mxu0 0
        %1132 = vmatprep.mubr.bf16.mxu0 0
        %1133 = vmatmul.mubr.bf16.gmra.mxu0 %v1095
        %v1134 = vpop.f32.mrf.mxu0
        %v1135 = vadd.f32 %v312, %v1134
        %v1136 = vpop.f32.mrf.mxu0
        %v1137 = vpop.f32.mrf.mxu0
        %v1138 = vpop.f32.mrf.mxu0
        %1139 = vdwg.mxu0
        %v1140 = vsel %vm464, %v1135, -inf
        %1141 = vmax.xlane.f32.xlu0 %v1140
        %v1142 = vpop.xlane.xlu0 %1141
        %v1143 = vsub.f32 %v1135, %v1142
        %v1144 = vmul.f32 %v1143, 1.442695
        %v1145 = vpow.pop %v1144
        %v1146 = vsel %vm464, %v1145, 0.0
        %1147 = vadd.xlane.f32.xlu0 %v1146
        %v1148 = vpop.xlane.xlu0 %1147
        %v1149 = vpack.c.bf16 %v1145, %v1145
        %1150 = vrot.lane.b32.xlu0 %v980, 48
        %v1151 = vpop.permute.xlu0 %1150
        %v1153 = vsel %vm464, %v1149, 0
        %v1156 = vsel %vm480, %v1151, 0
        %1158 = vmatprep.subr.bf16.mxu0 0
        %1159 = vmatpush1.bf16.msra.mxu0 0
        %1160 = vmatprep.subr.bf16.mxu0 0
        %1161 = vmatpush1.bf16.msra.mxu0 0
        %1162 = vmatprep.subr.bf16.mxu0 0
        %1163 = vmatpush1.bf16.msra.mxu0 0
        %1164 = vmatprep.subr.bf16.mxu0 0
        %1165 = vmatpush1.bf16.msra.mxu0 0
        %1166 = vmatprep.subr.bf16.mxu0 0
        %1167 = vmatpush1.bf16.msra.mxu0 0
        %1168 = vmatprep.subr.bf16.mxu0 0
        %1169 = vmatpush1.bf16.msra.mxu0 0
        %1170 = vmatprep.subr.bf16.mxu0 0
        %1171 = vmatpush1.bf16.msra.mxu0 0
        %1172 = vmatprep.subr.bf16.mxu0 0
        %1173 = vmatpush1.bf16.msra.mxu0 %v1156
        %1174 = vmatprep.subr.bf16.mxu0 0
        %1175 = vmatpush2.bf16.msra.mxu0 0
        %1176 = vmatprep.subr.bf16.mxu0 0
        %1177 = vmatpush2.bf16.msra.mxu0 0
        %1178 = vmatprep.subr.bf16.mxu0 0
        %1179 = vmatpush2.bf16.msra.mxu0 0
        %1180 = vmatprep.subr.bf16.mxu0 0
        %1181 = vmatpush2.bf16.msra.mxu0 0
        %1182 = vmatprep.subr.bf16.mxu0 0
        %1183 = vmatpush2.bf16.msra.mxu0 0
        %1184 = vmatprep.subr.bf16.mxu0 0
        %1185 = vmatpush2.bf16.msra.mxu0 0
        %1186 = vmatprep.subr.bf16.mxu0 0
        %1187 = vmatpush2.bf16.msra.mxu0 0
        %1188 = vmatprep.subr.bf16.mxu0 0
        %1189 = vmatpush2.bf16.msra.mxu0 0
        %1190 = vmatprep.mubr.bf16.mxu0 0
        %1191 = vmatmul.mubr.bf16.gmra.mxu0 %v1153
        %v1192 = vpop.f32.mrf.mxu0
        %v1193 = vadd.f32 0.0, %v1192
        %v1194 = vpop.f32.mrf.mxu0
        %v1195 = vpop.f32.mrf.mxu0
        %v1196 = vpop.f32.mrf.mxu0
        %1197 = vdwg.mxu0
        %v1198 = vrcp.pop %v1148
        %v1199 = vmul.f32 %v1193, %v1198
        %1201 = vrot.lane.b32.xlu0 %v1199, 16
        %v1202 = vpop.permute.xlu0 %1201
        %v1204 = vsel %vm417, %v1089, %v1202
        %v1205 = vpack.c.bf16 %v1204, %v1204
        %s1206 = scalar_lea.vmem %s4, 16
        %v1207 = vld [vmem:[%s1206] sm:$0xf]
        %v1208 = vld [vmem:[%s1206 + $0x4] sm:$0xf]
        %v1209 = vld [vmem:[%s1206 + $0x8] sm:$0xf]
        %v1210 = vld [vmem:[%s1206 + $0xc] sm:$0xf]
        %v1211 = vlaneseq
        %v1212 = vshrl.u32 %v1211, 7
        %v1213 = vsub.s32 0, %v1212
        %v1214 = vrot.slane %v908, %v1213
        %v1219 = vunpack.c.l.b16 %v1207
        %v1220 = vunpack.c.l.b16 %v1208
        %v1221 = vunpack.c.l.b16 %v1209
        %v1222 = vunpack.c.l.b16 %v1210
        %v1223 = vpack.c.b16 %v1220, %v1219
        %v1224 = vpack.c.b16 %v1222, %v1221
        %v1228 = vsel %vm316, %v1205, 0
        %1230 = vmatprep.subr.bf16.mxu0 0
        %1231 = vmatpush1.bf16.msra.mxu0 0
        %1232 = vmatprep.subr.bf16.mxu0 0
        %1233 = vmatpush1.bf16.msra.mxu0 0
        %1234 = vmatprep.subr.bf16.mxu0 0
        %1235 = vmatpush1.bf16.msra.mxu0 0
        %1236 = vmatprep.subr.bf16.mxu0 0
        %1237 = vmatpush1.bf16.msra.mxu0 0
        %1238 = vmatprep.subr.bf16.mxu0 0
        %1239 = vmatpush1.bf16.msra.mxu0 0
        %1240 = vmatprep.subr.bf16.mxu0 0
        %1241 = vmatpush1.bf16.msra.mxu0 0
        %1242 = vmatprep.subr.bf16.mxu0 0
        %1243 = vmatpush1.bf16.msra.mxu0 %v1224
        %1244 = vmatprep.subr.bf16.mxu0 0
        %1245 = vmatpush1.bf16.msra.mxu0 %v1223
        %1246 = vmatprep.subr.bf16.mxu0 0
        %1247 = vmatpush2.bf16.msra.mxu0 0
        %1248 = vmatprep.subr.bf16.mxu0 0
        %1249 = vmatpush2.bf16.msra.mxu0 0
        %1250 = vmatprep.subr.bf16.mxu0 0
        %1251 = vmatpush2.bf16.msra.mxu0 0
        %1252 = vmatprep.subr.bf16.mxu0 0
        %1253 = vmatpush2.bf16.msra.mxu0 0
        %1254 = vmatprep.subr.bf16.mxu0 0
        %1255 = vmatpush2.bf16.msra.mxu0 0
        %1256 = vmatprep.subr.bf16.mxu0 0
        %1257 = vmatpush2.bf16.msra.mxu0 0
        %1258 = vmatprep.subr.bf16.mxu0 0
        %1259 = vmatpush2.bf16.msra.mxu0 0
        %1260 = vmatprep.subr.bf16.mxu0 0
        %1261 = vmatpush2.bf16.msra.mxu0 0
        %1262 = vmatprep.mubr.bf16.mxu0 0
        %1263 = vmatmul.mubr.bf16.gmra.mxu0 %v1228
        %v1264 = vpop.f32.mrf.mxu0
        %v1265 = vadd.f32 %v1214, %v1264
        %v1266 = vpop.f32.mrf.mxu0
        %v1267 = vpop.f32.mrf.mxu0
        %v1268 = vpop.f32.mrf.mxu0
        %1269 = vdwg.mxu0
        %v1270 = vadd.f32 %v906, %v1265
        %v1271 = vsel %vm316, %v1270, 0.0
        %1272 = vadd.xlane.f32.xlu0 %v1271
        %v1273 = vpop.xlane.xlu0 %1272
        %v1274 = vmul.f32 %v1273, %v320
        %v1275 = vsub.f32 %v1270, %v1274
        %v1276 = vmul.f32 %v1275, %v1275
        %v1277 = vsel %vm316, %v1276, 0.0
        %1278 = vadd.xlane.f32.xlu0 %v1277
        %v1279 = vpop.xlane.xlu0 %1278
        %v1280 = vmul.f32 %v1279, %v320
        %v1281 = vadd.f32 %v1280, 1e-12
        %v1282 = vrsqrt.pop %v1281
        %v1283 = vmul.f32 %v1275, %v1282
        %v1284 = vlaneseq
        %v1285 = vshrl.u32 %v1284, 7
        %v1286 = vsub.s32 0, %v1285
        %v1287 = vrot.slane %v909, %v1286
        %v1288 = vmul.f32 %v1283, %v1287
        %v1289 = vlaneseq
        %v1290 = vshrl.u32 %v1289, 7
        %v1291 = vsub.s32 0, %v1290
        %v1292 = vrot.slane %v910, %v1291
        %v1293 = vadd.f32 %v1288, %v1292
        %v1294 = vpack.c.bf16 %v1293, %v1293
        %s1295 = scalar_lea.vmem %s5, 16
        %v1296 = vld [vmem:[%s1295] sm:$0xf]
        %v1297 = vld [vmem:[%s1295 + $0x4] sm:$0xf]
        %v1298 = vld [vmem:[%s1295 + $0x8] sm:$0xf]
        %v1299 = vld [vmem:[%s1295 + $0xc] sm:$0xf]
        %v1300 = vlaneseq
        %v1301 = vshrl.u32 %v1300, 7
        %v1302 = vsub.s32 0, %v1301
        %v1303 = vrot.slane %v911, %v1302
        %v1308 = vunpack.c.l.b16 %v1296
        %v1309 = vunpack.c.l.b16 %v1297
        %v1310 = vunpack.c.l.b16 %v1298
        %v1311 = vunpack.c.l.b16 %v1299
        %v1312 = vpack.c.b16 %v1309, %v1308
        %v1313 = vpack.c.b16 %v1311, %v1310
        %v1317 = vsel %vm316, %v1294, 0
        %1319 = vmatprep.subr.bf16.mxu0 0
        %1320 = vmatpush1.bf16.msra.mxu0 0
        %1321 = vmatprep.subr.bf16.mxu0 0
        %1322 = vmatpush1.bf16.msra.mxu0 0
        %1323 = vmatprep.subr.bf16.mxu0 0
        %1324 = vmatpush1.bf16.msra.mxu0 0
        %1325 = vmatprep.subr.bf16.mxu0 0
        %1326 = vmatpush1.bf16.msra.mxu0 0
        %1327 = vmatprep.subr.bf16.mxu0 0
        %1328 = vmatpush1.bf16.msra.mxu0 0
        %1329 = vmatprep.subr.bf16.mxu0 0
        %1330 = vmatpush1.bf16.msra.mxu0 0
        %1331 = vmatprep.subr.bf16.mxu0 0
        %1332 = vmatpush1.bf16.msra.mxu0 %v1313
        %1333 = vmatprep.subr.bf16.mxu0 0
        %1334 = vmatpush1.bf16.msra.mxu0 %v1312
        %1335 = vmatprep.subr.bf16.mxu0 0
        %1336 = vmatpush2.bf16.msra.mxu0 0
        %1337 = vmatprep.subr.bf16.mxu0 0
        %1338 = vmatpush2.bf16.msra.mxu0 0
        %1339 = vmatprep.subr.bf16.mxu0 0
        %1340 = vmatpush2.bf16.msra.mxu0 0
        %1341 = vmatprep.subr.bf16.mxu0 0
        %1342 = vmatpush2.bf16.msra.mxu0 0
        %1343 = vmatprep.subr.bf16.mxu0 0
        %1344 = vmatpush2.bf16.msra.mxu0 0
        %1345 = vmatprep.subr.bf16.mxu0 0
        %1346 = vmatpush2.bf16.msra.mxu0 0
        %1347 = vmatprep.subr.bf16.mxu0 0
        %1348 = vmatpush2.bf16.msra.mxu0 0
        %1349 = vmatprep.subr.bf16.mxu0 0
        %1350 = vmatpush2.bf16.msra.mxu0 0
        %1351 = vmatprep.mubr.bf16.mxu0 0
        %1352 = vmatmul.mubr.bf16.gmra.mxu0 %v1317
        %v1353 = vpop.f32.mrf.mxu0
        %v1354 = vadd.f32 %v1303, %v1353
        %v1355 = vpop.f32.mrf.mxu0
        %v1356 = vpop.f32.mrf.mxu0
        %v1357 = vpop.f32.mrf.mxu0
        %1358 = vdwg.mxu0
        %v1359 = vmul.f32 %v1354, 0.5
        %v1360 = vmul.f32 %v1354, 0.044715
        %v1361 = vmul.f32 %v1360, %v1354
        %v1362 = vmul.f32 %v1361, %v1354
        %v1363 = vadd.f32 %v1354, %v1362
        %v1364 = vmul.f32 %v1363, 0.7978846
        %v1365 = vtanh.pop %v1364
        %v1366 = vadd.f32 %v1365, 1.0
        %v1367 = vmul.f32 %v1359, %v1366
        %v1368 = vpack.c.bf16 %v1367, %v1367
        %s1369 = scalar_lea.vmem %s6, 32
        %v1370 = vld [vmem:[%s1369] sm:$0xf]
        %v1371 = vld [vmem:[%s1369 + $0x4] sm:$0xf]
        %v1372 = vld [vmem:[%s1369 + $0x8] sm:$0xf]
        %v1373 = vld [vmem:[%s1369 + $0xc] sm:$0xf]
        %v1374 = vld [vmem:[%s1369 + $0x10] sm:$0xf]
        %v1375 = vld [vmem:[%s1369 + $0x14] sm:$0xf]
        %v1376 = vld [vmem:[%s1369 + $0x18] sm:$0xf]
        %v1377 = vld [vmem:[%s1369 + $0x1c] sm:$0xf]
        %v1378 = vlaneseq
        %v1379 = vshrl.u32 %v1378, 7
        %v1380 = vsub.s32 0, %v1379
        %v1381 = vrot.slane %v912, %v1380
        %v1390 = vunpack.c.l.b16 %v1370
        %v1391 = vunpack.c.l.b16 %v1371
        %v1392 = vunpack.c.l.b16 %v1372
        %v1393 = vunpack.c.l.b16 %v1373
        %v1394 = vunpack.c.l.b16 %v1374
        %v1395 = vunpack.c.l.b16 %v1375
        %v1396 = vunpack.c.l.b16 %v1376
        %v1397 = vunpack.c.l.b16 %v1377
        %v1398 = vpack.c.b16 %v1391, %v1390
        %v1399 = vpack.c.b16 %v1393, %v1392
        %v1400 = vpack.c.b16 %v1395, %v1394
        %v1401 = vpack.c.b16 %v1397, %v1396
        %v1407 = vsel %vm839, %v1368, 0
        %1409 = vmatprep.subr.bf16.mxu0 0
        %1410 = vmatpush1.bf16.msra.mxu0 0
        %1411 = vmatprep.subr.bf16.mxu0 0
        %1412 = vmatpush1.bf16.msra.mxu0 0
        %1413 = vmatprep.subr.bf16.mxu0 0
        %1414 = vmatpush1.bf16.msra.mxu0 0
        %1415 = vmatprep.subr.bf16.mxu0 0
        %1416 = vmatpush1.bf16.msra.mxu0 0
        %1417 = vmatprep.subr.bf16.mxu0 0
        %1418 = vmatpush1.bf16.msra.mxu0 %v1401
        %1419 = vmatprep.subr.bf16.mxu0 0
        %1420 = vmatpush1.bf16.msra.mxu0 %v1400
        %1421 = vmatprep.subr.bf16.mxu0 0
        %1422 = vmatpush1.bf16.msra.mxu0 %v1399
        %1423 = vmatprep.subr.bf16.mxu0 0
        %1424 = vmatpush1.bf16.msra.mxu0 %v1398
        %1425 = vmatprep.subr.bf16.mxu0 0
        %1426 = vmatpush2.bf16.msra.mxu0 0
        %1427 = vmatprep.subr.bf16.mxu0 0
        %1428 = vmatpush2.bf16.msra.mxu0 0
        %1429 = vmatprep.subr.bf16.mxu0 0
        %1430 = vmatpush2.bf16.msra.mxu0 0
        %1431 = vmatprep.subr.bf16.mxu0 0
        %1432 = vmatpush2.bf16.msra.mxu0 0
        %1433 = vmatprep.subr.bf16.mxu0 0
        %1434 = vmatpush2.bf16.msra.mxu0 0
        %1435 = vmatprep.subr.bf16.mxu0 0
        %1436 = vmatpush2.bf16.msra.mxu0 0
        %1437 = vmatprep.subr.bf16.mxu0 0
        %1438 = vmatpush2.bf16.msra.mxu0 0
        %1439 = vmatprep.subr.bf16.mxu0 0
        %1440 = vmatpush2.bf16.msra.mxu0 0
        %1441 = vmatprep.mubr.bf16.mxu0 0
        %1442 = vmatmul.mubr.bf16.gmra.mxu0 %v1407
        %v1443 = vpop.f32.mrf.mxu0
        %v1444 = vadd.f32 %v1381, %v1443
        %v1445 = vpop.f32.mrf.mxu0
        %v1446 = vpop.f32.mrf.mxu0
        %v1447 = vpop.f32.mrf.mxu0
        %1448 = vdwg.mxu0
        %v1449 = vadd.f32 %v1293, %v1444
        %v1450 = vsel %vm316, %v1449, 0.0
        %1451 = vadd.xlane.f32.xlu0 %v1450
        %v1452 = vpop.xlane.xlu0 %1451
        %v1453 = vmul.f32 %v1452, %v320
        %v1454 = vsub.f32 %v1449, %v1453
        %v1455 = vmul.f32 %v1454, %v1454
        %v1456 = vsel %vm316, %v1455, 0.0
        %1457 = vadd.xlane.f32.xlu0 %v1456
        %v1458 = vpop.xlane.xlu0 %1457
        %v1459 = vmul.f32 %v1458, %v320
        %v1460 = vadd.f32 %v1459, 1e-12
        %v1461 = vrsqrt.pop %v1460
        %v1462 = vmul.f32 %v1454, %v1461
        %v1463 = vlaneseq
        %v1464 = vshrl.u32 %v1463, 7
        %v1465 = vsub.s32 0, %v1464
        %v1466 = vrot.slane %v913, %v1465
        %v1467 = vmul.f32 %v1462, %v1466
        %v1468 = vlaneseq
        %v1469 = vshrl.u32 %v1468, 7
        %v1470 = vsub.s32 0, %v1469
        %v1471 = vrot.slane %v914, %v1470
        %v1472 = vadd.f32 %v1467, %v1471
        %1473 = vst.msk [vmem:[%s282] sm:$0xff] %vm316, %v1472
        %s1474 = sand.u32 %s186, 1
        %s1475 = scalar_lea.sflag [#allocation3], %s1474
        %s1476 = sand.u32 %s186, 1
        %s1477 = smul.addr %s1476, 8
        %s1478 = scalar_lea.vmem [#allocation2], %s1477
        // Predicated region
        $region49: #{wordpiece_transformers_forward.1} parent=47 // pred_check
          %p1479 = pneg %p196
        $region50: #{wordpiece_transformers_forward.1} parent=47 // pred_check_branch
          %1481 = sbr.rel (%p1479) target = $region52
        $region51: #{wordpiece_transformers_forward.1} parent=47 // pred_region
          %s1483 = ssub.s32 128, 128
          %1484 = vsyncadd %s1475, %s1483
          %s1485 = smul.addr %s21, 128
          %s1486 = scalar_lea.hbm %s7, %s1485
          %s1488 = sshll.u32 %s1478, 4
          %s1489 = int_to_ptr.vmem [resolvable:$true] %s1488
          %1491 = dma.vmem_to_hbm [thread:$0]  %s1489, 128, %s1486, %s1475
        $region52: #{wordpiece_transformers_forward.1} parent=47 // pred_fallthru
          _
      $region48: #{wordpiece_transformers_forward.1} parent=5 // pred_fallthru
        _
      %p1492 = scmp.le.s32.totalorder 2, %s16
      // Predicated region
      $region53: #{wordpiece_transformers_forward.1} parent=5 // pred_check
        %p1493 = pneg %p1492
      $region54: #{wordpiece_transformers_forward.1} parent=5 // pred_check_branch
        %1495 = sbr.rel (%p1493) target = $region56
      $region55: #{wordpiece_transformers_forward.1} parent=5 // pred_region
        %s1496 = ssub.s32 %s16, 2
        // Predicated region
        $region57: #{wordpiece_transformers_forward.1} parent=55 // pred_check
          %p1497 = pneg %p202
        $region58: #{wordpiece_transformers_forward.1} parent=55 // pred_check_branch
          %1499 = sbr.rel (%p1497) target = $region60
        $region59: #{wordpiece_transformers_forward.1} parent=55 // pred_region
          %s1500 = sand.u32 %s187, 1
          %s1501 = scalar_lea.sflag [#allocation3], %s1500
          %s1502 = sand.u32 %s187, 1
          %s1503 = smul.addr %s1502, 8
          %s1504 = scalar_lea.vmem [#allocation2], %s1503
          %1505 = dma.done %s1501, 128
        $region60: #{wordpiece_transformers_forward.1} parent=55 // pred_fallthru
          _
      $region56: #{wordpiece_transformers_forward.1} parent=5 // pred_fallthru
        _
    $region6: #{wordpiece_transformers_forward.1} parent=1 // loop_footer
      %s20 = sadd.s32 1, %s16
    $region7: #{wordpiece_transformers_forward.1} parent=1 // loop_footer_branch
      %15 = sbr.rel target = $region3
    $region8: #{wordpiece_transformers_forward.1} parent=1 // loop_exit
      _
    %1506 = vsyncpa [#allocation3], 1
    %s1507 = scalar_lea.sflag [#allocation3], 1
    %1508 = vsyncpa %s1507, 1

</llo_original>
